<compile_context>
chip_gen: v5e
topology: v5e:2x2
jax: 0.10.0
libtpu: 0.0.40
codegen_flags: <defaults>
</compile_context>

<pallas_src>
import functools

import jax
import jax.numpy as jnp
from jax.experimental import pallas as pl
from jax.experimental.pallas import tpu as pltpu

IN_EPS = 1e-5        # nn.InstanceNorm2d default eps
LRELU_SLOPE = 0.1    # LeakyReLU slope inside _Residual_Block


# ----------------------------------------------------------------------------
# Pallas kernel: transposed conv-matmul + fused InstanceNorm / act / residual
# ----------------------------------------------------------------------------
def _conv_fused_kernel(*refs, m_tiles, norm, act, residual):
    """Grid = (batch, m_tiles).  Per step: y[Cout, tm] = W[Cout,K] @ P[K,tm].

    Tiles are parked in an f32 VMEM accumulator; the epilogue (last M tile)
    computes InstanceNorm stats over the full spatial extent, applies the
    activation / residual, and stores the bf16 output block once.
    """
    if residual:
        p_ref, w_ref, r_ref, o_ref, acc_ref = refs
    else:
        p_ref, w_ref, o_ref, acc_ref = refs
        r_ref = None

    mi = pl.program_id(1)

    # MXU matmul, f32 accumulation; M (spatial) is the lane-dense dimension.
    y = jnp.dot(w_ref[...], p_ref[0], preferred_element_type=jnp.float32)
    acc_ref[mi] = y                      # dynamic index on the outer axis only

    @pl.when(mi == m_tiles - 1)
    def _epilogue():
        cout, tm = acc_ref.shape[1], acc_ref.shape[2]
        m_total = m_tiles * tm

        if norm:
            # InstanceNorm2d (affine=False): per-channel stats over the full
            # spatial extent, biased variance, centered form, all in f32.
            s = jnp.zeros((cout, 1), jnp.float32)
            for t in range(m_tiles):                     # static unrolled loop
                s = s + jnp.sum(acc_ref[t], axis=1, keepdims=True)
            mu = s * (1.0 / m_total)
            v = jnp.zeros((cout, 1), jnp.float32)
            for t in range(m_tiles):
                d = acc_ref[t] - mu
                v = v + jnp.sum(d * d, axis=1, keepdims=True)
            inv = jax.lax.rsqrt(v * (1.0 / m_total) + IN_EPS)

        for t in range(m_tiles):                         # static slices only
            z = acc_ref[t]
            if norm:
                z = (z - mu) * inv
            if act == "relu":
                z = jnp.maximum(z, 0.0)
            elif act == "lrelu":
                z = jnp.where(z >= 0.0, z, LRELU_SLOPE * z)
            if residual:
                z = z + r_ref[0, :, t * tm:(t + 1) * tm].astype(jnp.float32)
            o_ref[0, :, t * tm:(t + 1) * tm] = z.astype(o_ref.dtype)


# ----------------------------------------------------------------------------
# JAX glue: padding + patch extraction, layer wrapper
# ----------------------------------------------------------------------------
def conv_layer(x_nchw, w2d, *, k, stride, pad, pad_mode,
               norm, act, residual=None, m_tile=512):
    """pad -> patches (NCHW/K-major) -> fused Pallas matmul(+IN+act+residual).

    x_nchw:   [B, Cin, H, W]   bf16
    w2d:      [Cout, Cin*k*k]  bf16 (pure reshape of the PyTorch weight)
    residual: optional [B, Cout, Ho, Wo] skip added after the norm.
    """
    B = x_nchw.shape[0]
    cout = w2d.shape[0]
    if pad > 0:
        x_nchw = jnp.pad(
            x_nchw, ((0, 0), (0, 0), (pad, pad), (pad, pad)), mode=pad_mode)

    # [B, Cin*k*k, Ho, Wo]; feature order (cin, kh, kw) matches w2d's packing.
    p = jax.lax.conv_general_dilated_patches(
        x_nchw, (k, k), (stride, stride), padding="VALID")
    _, K, Ho, Wo = p.shape
    M = Ho * Wo
    p = p.reshape(B, K, M)

    # Spatial (M) tiling: lane-aligned tiles, fall back to full extent.
    if M % 128 == 0 and m_tile % 128 == 0 and M % m_tile == 0 and M > m_tile:
        tm = m_tile
    else:
        tm = M
    mt = M // tm

    kernel = functools.partial(
        _conv_fused_kernel, m_tiles=mt, norm=norm, act=act,
        residual=residual is not None)

    in_specs = [
        pl.BlockSpec((1, K, tm), lambda b, m: (b, 0, m)),    # patches tile
        pl.BlockSpec((cout, K), lambda b, m: (0, 0)),        # weight: resident
    ]
    args = [p, w2d]
    if residual is not None:
        in_specs.append(pl.BlockSpec((1, cout, M), lambda b, m: (b, 0, 0)))
        args.append(residual.reshape(B, cout, M))

    out = pl.pallas_call(
        kernel,
        out_shape=jax.ShapeDtypeStruct((B, cout, M), jnp.bfloat16),
        grid=(B, mt),
        in_specs=in_specs,
        out_specs=pl.BlockSpec((1, cout, M), lambda b, m: (b, 0, 0)),
        scratch_shapes=[pltpu.VMEM((mt, cout, tm), jnp.float32)],
        compiler_params=pltpu.CompilerParams(
            dimension_semantics=("parallel", "arbitrary"),
            vmem_limit_bytes=64 * 1024 * 1024),
    )(*args)
    return out.reshape(B, cout, Ho, Wo)


# ----------------------------------------------------------------------------
# Parameters (weights pre-packed once, bf16) + forward
# ----------------------------------------------------------------------------
def _pack(w):
    """PyTorch conv weight [Cout, Cin, kH, kW] -> bf16 [Cout, Cin*kH*kW]."""
    return w.reshape(w.shape[0], -1).astype(jnp.bfloat16)


def init_params(key, ngf=8, n_blocks=2):
    keys = jax.random.split(key, 3 + 2 * n_blocks)
    raw = {
        "conv_in": 0.05 * jax.random.normal(keys[0], (ngf, 3, 3, 3), jnp.float32),
        "conv7":   0.05 * jax.random.normal(keys[1], (ngf, ngf, 7, 7), jnp.float32),
        "down":    0.05 * jax.random.normal(keys[2], (2 * ngf, ngf, 3, 3), jnp.float32),
        "blocks":  [],
    }
    for i in range(n_blocks):
        raw["blocks"].append(dict(
            w1=0.05 * jax.random.normal(keys[3 + 2 * i], (2 * ngf, 2 * ngf, 3, 3), jnp.float32),
            w2=0.05 * jax.random.normal(keys[4 + 2 * i], (2 * ngf, 2 * ngf, 3, 3), jnp.float32)))
    params = {
        "conv_in": _pack(raw["conv_in"]),
        "conv7":   _pack(raw["conv7"]),
        "down":    _pack(raw["down"]),
        "blocks":  [dict(w1=_pack(b["w1"]), w2=_pack(b["w2"])) for b in raw["blocks"]],
    }
    return params, raw


def intrinsic_encoder_forward(params, x_nchw, *, m_tile=512):
    x = x_nchw.astype(jnp.bfloat16)          # NCHW throughout; bf16 storage

    # conv_in: Conv2d(3 -> ngf, k3, s1, p1 zero-pad, bias=False); no norm/act.
    x = conv_layer(x, params["conv_in"], k=3, stride=1, pad=1,
                   pad_mode="constant", norm=False, act="none", m_tile=m_tile)
    # ReflectionPad(3) + Conv(ngf -> ngf, k7, s1) + InstanceNorm + ReLU.
    x = conv_layer(x, params["conv7"], k=7, stride=1, pad=3,
                   pad_mode="reflect", norm=True, act="relu", m_tile=m_tile)
    # ReflectionPad(1) + Conv(ngf -> 2ngf, k3, s2) + InstanceNorm + ReLU.
    x = conv_layer(x, params["down"], k=3, stride=2, pad=1,
                   pad_mode="reflect", norm=True, act="relu", m_tile=m_tile)
    # Residual blocks at dim 2*ngf.
    for blk in params["blocks"]:
        h = conv_layer(x, blk["w1"], k=3, stride=1, pad=1,
                       pad_mode="reflect", norm=True, act="lrelu", m_tile=m_tile)
        x = conv_layer(h, blk["w2"], k=3, stride=1, pad=1,
                       pad_mode="reflect", norm=True, act="none",
                       residual=x, m_tile=m_tile)
    return x.astype(jnp.float32)             # NCHW, like the PyTorch module


# ----------------------------------------------------------------------------
# Pure-JAX f32 reference (matches the PyTorch module) for a semantics check
# ----------------------------------------------------------------------------
def _ref_conv(x, w, stride, pad, mode):
    if pad > 0:
        x = jnp.pad(x, ((0, 0), (0, 0), (pad, pad), (pad, pad)), mode=mode)
    return jax.lax.conv_general_dilated(
        x, w, (stride, stride), "VALID",
        dimension_numbers=("NCHW", "OIHW", "NCHW"))


def _ref_instance_norm(x):
    mu = jnp.mean(x, axis=(2, 3), keepdims=True)
    var = jnp.mean(jnp.square(x - mu), axis=(2, 3), keepdims=True)
    return (x - mu) * jax.lax.rsqrt(var + IN_EPS)


def reference_forward(raw, x):
    x = _ref_conv(x, raw["conv_in"], 1, 1, "constant")
    x = jax.nn.relu(_ref_instance_norm(_ref_conv(x, raw["conv7"], 1, 3, "reflect")))
    x = jax.nn.relu(_ref_instance_norm(_ref_conv(x, raw["down"], 2, 1, "reflect")))
    for blk in raw["blocks"]:
        h = _ref_instance_norm(_ref_conv(x, blk["w1"], 1, 1, "reflect"))
        h = jnp.where(h >= 0.0, h, LRELU_SLOPE * h)
        x = x + _ref_instance_norm(_ref_conv(h, blk["w2"], 1, 1, "reflect"))
    return x


if __name__ == "__main__":
    key = jax.random.PRNGKey(0)
    k_par, k_x = jax.random.split(key)
    NGF, N_BLOCKS = 8, 2
    params, raw = init_params(k_par, ngf=NGF, n_blocks=N_BLOCKS)
    x = jax.random.normal(k_x, (2, 3, 16, 16), jnp.float32)   # NCHW like PyTorch

    # m_tile=128 so the M-tiled accumulation path is exercised at 16x16.
    fwd = jax.jit(functools.partial(intrinsic_encoder_forward, m_tile=128))
    out = fwd(params, x)
    jax.block_until_ready(out)
    assert out.shape == (2, 2 * NGF, 8, 8), out.shape

    # Semantics check vs. f32 reference (loose tolerance: bf16 storage path).
    ref = reference_forward(raw, x)
    err = float(jnp.max(jnp.abs(out - ref)))
    assert err < 0.3, f"max abs err vs reference: {err}"
    print("KERNEL_OK")
</pallas_src>

<mosaic_0001>
module attributes {stable_mosaic.version = 11 : i64} {
  func.func @_conv_fused_kernel(%arg0: i32, %arg1: i32, %arg2: memref<1x27x128xbf16, #tpu.memory_space<vmem>>, %arg3: memref<8x27xbf16, #tpu.memory_space<vmem>>, %arg4: memref<1x8x256xbf16, #tpu.memory_space<vmem>>, %arg5: memref<2x8x128xf32, #tpu.memory_space<vmem>>) attributes {dimension_semantics = [#tpu.dimension_semantics<parallel>, #tpu.dimension_semantics<arbitrary>], iteration_bounds = array<i64: 2, 2>, scalar_prefetch = 0 : i64, scratch_operands = 1 : i64, tpu.core_type = #tpu.core_type<tc>, window_params = [{transform_indices = @transform_0, window_bounds = array<i64: 1, 27, 128>}, {pipeline_mode = #tpu.pipeline_mode<synchronous>, transform_indices = @transform_1, window_bounds = array<i64: 8, 27>}, {transform_indices = @transform_2, window_bounds = array<i64: 1, 8, 256>}]} {
    %c0 = arith.constant 0 : index
    %c0_0 = arith.constant 0 : index
    %0 = vector.load %arg3[%c0, %c0_0] : memref<8x27xbf16, #tpu.memory_space<vmem>>, vector<8x27xbf16>
    %c0_1 = arith.constant 0 : index
    %c0_2 = arith.constant 0 : index
    %c0_3 = arith.constant 0 : index
    %1 = vector.load %arg2[%c0_1, %c0_2, %c0_3] : memref<1x27x128xbf16, #tpu.memory_space<vmem>>, vector<1x27x128xbf16>
    %2 = vector.shape_cast %1 : vector<1x27x128xbf16> to vector<27x128xbf16>
    %cst = arith.constant dense<0.000000e+00> : vector<8x128xf32>
    %3 = tpu.matmul %0, %2, %cst {dimension_numbers = #tpu.dot_dimension_numbers<[1], [0], [0], [1], [0, 0, 1, 1], [], []>} : vector<8x27xbf16>, vector<27x128xbf16>, vector<8x128xf32> -> vector<8x128xf32>
    %4 = arith.index_cast %arg1 : i32 to index
    %c0_4 = arith.constant 0 : index
    %c0_5 = arith.constant 0 : index
    %5 = vector.load %arg5[%4, %c0_4, %c0_5] : memref<2x8x128xf32, #tpu.memory_space<vmem>>, vector<1x8x128xf32>
    %6 = vector.shape_cast %5 : vector<1x8x128xf32> to vector<8x128xf32>
    %7 = vector.shape_cast %3 : vector<8x128xf32> to vector<1x8x128xf32>
    tpu.vector_store %arg5[%4, %c0_4, %c0_5], %7 {strides = array<i32>} : memref<2x8x128xf32, #tpu.memory_space<vmem>>, vector<1x8x128xf32>,
    %c1_i32 = arith.constant 1 : i32
    %8 = arith.cmpi eq, %arg1, %c1_i32 : i32
    %9 = arith.extui %8 : i1 to i32
    %c0_i32 = arith.constant 0 : i32
    %10 = arith.cmpi ne, %9, %c0_i32 : i32
    scf.if %10 {
      %c0_6 = arith.constant 0 : index
      %c0_7 = arith.constant 0 : index
      %c0_8 = arith.constant 0 : index
      %11 = vector.load %arg5[%c0_6, %c0_7, %c0_8] : memref<2x8x128xf32, #tpu.memory_space<vmem>>, vector<1x8x128xf32>
      %12 = vector.shape_cast %11 : vector<1x8x128xf32> to vector<8x128xf32>
      %13 = arith.truncf %12 : vector<8x128xf32> to vector<8x128xbf16>
      %c0_9 = arith.constant 0 : index
      %c0_10 = arith.constant 0 : index
      %c0_11 = arith.constant 0 : index
      %14 = vector.load %arg4[%c0_9, %c0_10, %c0_11] : memref<1x8x256xbf16, #tpu.memory_space<vmem>>, vector<1x8x128xbf16>
      %15 = vector.shape_cast %14 : vector<1x8x128xbf16> to vector<8x128xbf16>
      %16 = vector.shape_cast %13 : vector<8x128xbf16> to vector<1x8x128xbf16>
      tpu.vector_store %arg4[%c0_9, %c0_10, %c0_11], %16 {strides = array<i32>} : memref<1x8x256xbf16, #tpu.memory_space<vmem>>, vector<1x8x128xbf16>,
      %c1 = arith.constant 1 : index
      %c0_12 = arith.constant 0 : index
      %c0_13 = arith.constant 0 : index
      %17 = vector.load %arg5[%c1, %c0_12, %c0_13] : memref<2x8x128xf32, #tpu.memory_space<vmem>>, vector<1x8x128xf32>
      %18 = vector.shape_cast %17 : vector<1x8x128xf32> to vector<8x128xf32>
      %19 = arith.truncf %18 : vector<8x128xf32> to vector<8x128xbf16>
      %c0_14 = arith.constant 0 : index
      %c0_15 = arith.constant 0 : index
      %c128 = arith.constant 128 : index
      %20 = vector.load %arg4[%c0_14, %c0_15, %c128] : memref<1x8x256xbf16, #tpu.memory_space<vmem>>, vector<1x8x128xbf16>
      %21 = vector.shape_cast %20 : vector<1x8x128xbf16> to vector<8x128xbf16>
      %22 = vector.shape_cast %19 : vector<8x128xbf16> to vector<1x8x128xbf16>
      tpu.vector_store %arg4[%c0_14, %c0_15, %c128], %22 {strides = array<i32>} : memref<1x8x256xbf16, #tpu.memory_space<vmem>>, vector<1x8x128xbf16>,
    } else {
    }
    return
  }
  func.func @transform_0(%arg0: i32, %arg1: i32) -> (i32, i32, i32) {
    %c0_i32 = arith.constant 0 : i32
    %c0_i32_0 = arith.constant 0 : i32
    return %arg0, %c0_i32, %arg1 : i32, i32, i32
  }
  func.func @transform_1(%arg0: i32, %arg1: i32) -> (i32, i32) {
    %c0_i32 = arith.constant 0 : i32
    %c0_i32_0 = arith.constant 0 : i32
    %c0_i32_1 = arith.constant 0 : i32
    return %c0_i32, %c0_i32_0 : i32, i32
  }
  func.func @transform_2(%arg0: i32, %arg1: i32) -> (i32, i32, i32) {
    %c0_i32 = arith.constant 0 : i32
    %c0_i32_0 = arith.constant 0 : i32
    %c0_i32_1 = arith.constant 0 : i32
    return %arg0, %c0_i32, %c0_i32_0 : i32, i32, i32
  }
}

module attributes {stable_mosaic.version = 11 : i64} {
  func.func @_conv_fused_kernel(%arg0: i32, %arg1: i32, %arg2: memref<1x392x128xbf16, #tpu.memory_space<vmem>>, %arg3: memref<8x392xbf16, #tpu.memory_space<vmem>>, %arg4: memref<1x8x256xbf16, #tpu.memory_space<vmem>>, %arg5: memref<2x8x128xf32, #tpu.memory_space<vmem>>) attributes {dimension_semantics = [#tpu.dimension_semantics<parallel>, #tpu.dimension_semantics<arbitrary>], iteration_bounds = array<i64: 2, 2>, scalar_prefetch = 0 : i64, scratch_operands = 1 : i64, tpu.core_type = #tpu.core_type<tc>, window_params = [{transform_indices = @transform_0, window_bounds = array<i64: 1, 392, 128>}, {pipeline_mode = #tpu.pipeline_mode<synchronous>, transform_indices = @transform_1, window_bounds = array<i64: 8, 392>}, {transform_indices = @transform_2, window_bounds = array<i64: 1, 8, 256>}]} {
    %c0 = arith.constant 0 : index
    %c0_0 = arith.constant 0 : index
    %0 = vector.load %arg3[%c0, %c0_0] : memref<8x392xbf16, #tpu.memory_space<vmem>>, vector<8x392xbf16>
    %c0_1 = arith.constant 0 : index
    %c0_2 = arith.constant 0 : index
    %c0_3 = arith.constant 0 : index
    %1 = vector.load %arg2[%c0_1, %c0_2, %c0_3] : memref<1x392x128xbf16, #tpu.memory_space<vmem>>, vector<1x392x128xbf16>
    %2 = vector.shape_cast %1 : vector<1x392x128xbf16> to vector<392x128xbf16>
    %cst = arith.constant dense<0.000000e+00> : vector<8x128xf32>
    %3 = tpu.matmul %0, %2, %cst {dimension_numbers = #tpu.dot_dimension_numbers<[1], [0], [0], [1], [0, 0, 1, 1], [], []>} : vector<8x392xbf16>, vector<392x128xbf16>, vector<8x128xf32> -> vector<8x128xf32>
    %4 = arith.index_cast %arg1 : i32 to index
    %c0_4 = arith.constant 0 : index
    %c0_5 = arith.constant 0 : index
    %5 = vector.load %arg5[%4, %c0_4, %c0_5] : memref<2x8x128xf32, #tpu.memory_space<vmem>>, vector<1x8x128xf32>
    %6 = vector.shape_cast %5 : vector<1x8x128xf32> to vector<8x128xf32>
    %7 = vector.shape_cast %3 : vector<8x128xf32> to vector<1x8x128xf32>
    tpu.vector_store %arg5[%4, %c0_4, %c0_5], %7 {strides = array<i32>} : memref<2x8x128xf32, #tpu.memory_space<vmem>>, vector<1x8x128xf32>,
    %c1_i32 = arith.constant 1 : i32
    %8 = arith.cmpi eq, %arg1, %c1_i32 : i32
    %9 = arith.extui %8 : i1 to i32
    %c0_i32 = arith.constant 0 : i32
    %10 = arith.cmpi ne, %9, %c0_i32 : i32
    scf.if %10 {
      %cst_6 = arith.constant 0.000000e+00 : f32
      %11 = vector.broadcast %cst_6 : f32 to vector<8x1xf32>
      %c0_7 = arith.constant 0 : index
      %c0_8 = arith.constant 0 : index
      %c0_9 = arith.constant 0 : index
      %12 = vector.load %arg5[%c0_7, %c0_8, %c0_9] : memref<2x8x128xf32, #tpu.memory_space<vmem>>, vector<1x8x128xf32>
      %13 = vector.shape_cast %12 : vector<1x8x128xf32> to vector<8x128xf32>
      %cst_10 = arith.constant dense<0.000000e+00> : vector<8xf32>
      %14 = vector.multi_reduction <add>, %13, %cst_10 [1] : vector<8x128xf32> to vector<8xf32>
      %15 = vector.shape_cast %14 : vector<8xf32> to vector<8x1xf32>
      %16 = arith.addf %11, %15 : vector<8x1xf32>
      %c1 = arith.constant 1 : index
      %c0_11 = arith.constant 0 : index
      %c0_12 = arith.constant 0 : index
      %17 = vector.load %arg5[%c1, %c0_11, %c0_12] : memref<2x8x128xf32, #tpu.memory_space<vmem>>, vector<1x8x128xf32>
      %18 = vector.shape_cast %17 : vector<1x8x128xf32> to vector<8x128xf32>
      %cst_13 = arith.constant dense<0.000000e+00> : vector<8xf32>
      %19 = vector.multi_reduction <add>, %18, %cst_13 [1] : vector<8x128xf32> to vector<8xf32>
      %20 = vector.shape_cast %19 : vector<8xf32> to vector<8x1xf32>
      %21 = arith.addf %16, %20 : vector<8x1xf32>
      %cst_14 = arith.constant 3.906250e-03 : f32
      %22 = vector.broadcast %cst_14 : f32 to vector<8x1xf32>
      %23 = arith.mulf %21, %22 : vector<8x1xf32>
      %cst_15 = arith.constant 0.000000e+00 : f32
      %24 = vector.broadcast %cst_15 : f32 to vector<8x1xf32>
      %c0_16 = arith.constant 0 : index
      %c0_17 = arith.constant 0 : index
      %c0_18 = arith.constant 0 : index
      %25 = vector.load %arg5[%c0_16, %c0_17, %c0_18] : memref<2x8x128xf32, #tpu.memory_space<vmem>>, vector<1x8x128xf32>
      %26 = vector.shape_cast %25 : vector<1x8x128xf32> to vector<8x128xf32>
      %27 = vector.broadcast %23 : vector<8x1xf32> to vector<8x128xf32>
      %28 = arith.subf %26, %27 : vector<8x128xf32>
      %29 = arith.mulf %28, %28 : vector<8x128xf32>
      %cst_19 = arith.constant dense<0.000000e+00> : vector<8xf32>
      %30 = vector.multi_reduction <add>, %29, %cst_19 [1] : vector<8x128xf32> to vector<8xf32>
      %31 = vector.shape_cast %30 : vector<8xf32> to vector<8x1xf32>
      %32 = arith.addf %24, %31 : vector<8x1xf32>
      %c1_20 = arith.constant 1 : index
      %c0_21 = arith.constant 0 : index
      %c0_22 = arith.constant 0 : index
      %33 = vector.load %arg5[%c1_20, %c0_21, %c0_22] : memref<2x8x128xf32, #tpu.memory_space<vmem>>, vector<1x8x128xf32>
      %34 = vector.shape_cast %33 : vector<1x8x128xf32> to vector<8x128xf32>
      %35 = vector.broadcast %23 : vector<8x1xf32> to vector<8x128xf32>
      %36 = arith.subf %34, %35 : vector<8x128xf32>
      %37 = arith.mulf %36, %36 : vector<8x128xf32>
      %cst_23 = arith.constant dense<0.000000e+00> : vector<8xf32>
      %38 = vector.multi_reduction <add>, %37, %cst_23 [1] : vector<8x128xf32> to vector<8xf32>
      %39 = vector.shape_cast %38 : vector<8xf32> to vector<8x1xf32>
      %40 = arith.addf %32, %39 : vector<8x1xf32>
      %cst_24 = arith.constant 3.906250e-03 : f32
      %41 = vector.broadcast %cst_24 : f32 to vector<8x1xf32>
      %42 = arith.mulf %40, %41 : vector<8x1xf32>
      %cst_25 = arith.constant 9.99999974E-6 : f32
      %43 = vector.broadcast %cst_25 : f32 to vector<8x1xf32>
      %44 = arith.addf %42, %43 : vector<8x1xf32>
      %45 = math.rsqrt %44 : vector<8x1xf32>
      %c0_26 = arith.constant 0 : index
      %c0_27 = arith.constant 0 : index
      %c0_28 = arith.constant 0 : index
      %46 = vector.load %arg5[%c0_26, %c0_27, %c0_28] : memref<2x8x128xf32, #tpu.memory_space<vmem>>, vector<1x8x128xf32>
      %47 = vector.shape_cast %46 : vector<1x8x128xf32> to vector<8x128xf32>
      %48 = vector.broadcast %23 : vector<8x1xf32> to vector<8x128xf32>
      %49 = arith.subf %47, %48 : vector<8x128xf32>
      %50 = vector.broadcast %45 : vector<8x1xf32> to vector<8x128xf32>
      %51 = arith.mulf %49, %50 : vector<8x128xf32>
      %cst_29 = arith.constant 0.000000e+00 : f32
      %52 = vector.broadcast %cst_29 : f32 to vector<8x128xf32>
      %53 = arith.maximumf %51, %52 : vector<8x128xf32>
      %54 = arith.truncf %53 : vector<8x128xf32> to vector<8x128xbf16>
      %c0_30 = arith.constant 0 : index
      %c0_31 = arith.constant 0 : index
      %c0_32 = arith.constant 0 : index
      %55 = vector.load %arg4[%c0_30, %c0_31, %c0_32] : memref<1x8x256xbf16, #tpu.memory_space<vmem>>, vector<1x8x128xbf16>
      %56 = vector.shape_cast %55 : vector<1x8x128xbf16> to vector<8x128xbf16>
      %57 = vector.shape_cast %54 : vector<8x128xbf16> to vector<1x8x128xbf16>
      tpu.vector_store %arg4[%c0_30, %c0_31, %c0_32], %57 {strides = array<i32>} : memref<1x8x256xbf16, #tpu.memory_space<vmem>>, vector<1x8x128xbf16>,
      %c1_33 = arith.constant 1 : index
      %c0_34 = arith.constant 0 : index
      %c0_35 = arith.constant 0 : index
      %58 = vector.load %arg5[%c1_33, %c0_34, %c0_35] : memref<2x8x128xf32, #tpu.memory_space<vmem>>, vector<1x8x128xf32>
      %59 = vector.shape_cast %58 : vector<1x8x128xf32> to vector<8x128xf32>
      %60 = vector.broadcast %23 : vector<8x1xf32> to vector<8x128xf32>
      %61 = arith.subf %59, %60 : vector<8x128xf32>
      %62 = vector.broadcast %45 : vector<8x1xf32> to vector<8x128xf32>
      %63 = arith.mulf %61, %62 : vector<8x128xf32>
      %cst_36 = arith.constant 0.000000e+00 : f32
      %64 = vector.broadcast %cst_36 : f32 to vector<8x128xf32>
      %65 = arith.maximumf %63, %64 : vector<8x128xf32>
      %66 = arith.truncf %65 : vector<8x128xf32> to vector<8x128xbf16>
      %c0_37 = arith.constant 0 : index
      %c0_38 = arith.constant 0 : index
      %c128 = arith.constant 128 : index
      %67 = vector.load %arg4[%c0_37, %c0_38, %c128] : memref<1x8x256xbf16, #tpu.memory_space<vmem>>, vector<1x8x128xbf16>
      %68 = vector.shape_cast %67 : vector<1x8x128xbf16> to vector<8x128xbf16>
      %69 = vector.shape_cast %66 : vector<8x128xbf16> to vector<1x8x128xbf16>
      tpu.vector_store %arg4[%c0_37, %c0_38, %c128], %69 {strides = array<i32>} : memref<1x8x256xbf16, #tpu.memory_space<vmem>>, vector<1x8x128xbf16>,
    } else {
    }
    return
  }
  func.func @transform_0(%arg0: i32, %arg1: i32) -> (i32, i32, i32) {
    %c0_i32 = arith.constant 0 : i32
    %c0_i32_0 = arith.constant 0 : i32
    return %arg0, %c0_i32, %arg1 : i32, i32, i32
  }
  func.func @transform_1(%arg0: i32, %arg1: i32) -> (i32, i32) {
    %c0_i32 = arith.constant 0 : i32
    %c0_i32_0 = arith.constant 0 : i32
    %c0_i32_1 = arith.constant 0 : i32
    return %c0_i32, %c0_i32_0 : i32, i32
  }
  func.func @transform_2(%arg0: i32, %arg1: i32) -> (i32, i32, i32) {
    %c0_i32 = arith.constant 0 : i32
    %c0_i32_0 = arith.constant 0 : i32
    %c0_i32_1 = arith.constant 0 : i32
    return %arg0, %c0_i32, %c0_i32_0 : i32, i32, i32
  }
}

module attributes {stable_mosaic.version = 11 : i64} {
  func.func @_conv_fused_kernel(%arg0: i32, %arg1: i32, %arg2: memref<1x72x64xbf16, #tpu.memory_space<vmem>>, %arg3: memref<16x72xbf16, #tpu.memory_space<vmem>>, %arg4: memref<1x16x64xbf16, #tpu.memory_space<vmem>>, %arg5: memref<1x16x64xf32, #tpu.memory_space<vmem>>) attributes {dimension_semantics = [#tpu.dimension_semantics<parallel>, #tpu.dimension_semantics<arbitrary>], iteration_bounds = array<i64: 2, 1>, scalar_prefetch = 0 : i64, scratch_operands = 1 : i64, tpu.core_type = #tpu.core_type<tc>, window_params = [{transform_indices = @transform_0, window_bounds = array<i64: 1, 72, 64>}, {pipeline_mode = #tpu.pipeline_mode<synchronous>, transform_indices = @transform_1, window_bounds = array<i64: 16, 72>}, {transform_indices = @transform_2, window_bounds = array<i64: 1, 16, 64>}]} {
    %c0 = arith.constant 0 : index
    %c0_0 = arith.constant 0 : index
    %0 = vector.load %arg3[%c0, %c0_0] : memref<16x72xbf16, #tpu.memory_space<vmem>>, vector<16x72xbf16>
    %c0_1 = arith.constant 0 : index
    %c0_2 = arith.constant 0 : index
    %c0_3 = arith.constant 0 : index
    %1 = vector.load %arg2[%c0_1, %c0_2, %c0_3] : memref<1x72x64xbf16, #tpu.memory_space<vmem>>, vector<1x72x64xbf16>
    %2 = vector.shape_cast %1 : vector<1x72x64xbf16> to vector<72x64xbf16>
    %cst = arith.constant dense<0.000000e+00> : vector<16x64xf32>
    %3 = tpu.matmul %0, %2, %cst {dimension_numbers = #tpu.dot_dimension_numbers<[1], [0], [0], [1], [0, 0, 1, 1], [], []>} : vector<16x72xbf16>, vector<72x64xbf16>, vector<16x64xf32> -> vector<16x64xf32>
    %4 = arith.index_cast %arg1 : i32 to index
    %c0_4 = arith.constant 0 : index
    %c0_5 = arith.constant 0 : index
    %5 = vector.load %arg5[%4, %c0_4, %c0_5] : memref<1x16x64xf32, #tpu.memory_space<vmem>>, vector<1x16x64xf32>
    %6 = vector.shape_cast %5 : vector<1x16x64xf32> to vector<16x64xf32>
    %7 = vector.shape_cast %3 : vector<16x64xf32> to vector<1x16x64xf32>
    tpu.vector_store %arg5[%4, %c0_4, %c0_5], %7 {strides = array<i32>} : memref<1x16x64xf32, #tpu.memory_space<vmem>>, vector<1x16x64xf32>,
    %c0_i32 = arith.constant 0 : i32
    %8 = arith.cmpi eq, %arg1, %c0_i32 : i32
    %9 = arith.extui %8 : i1 to i32
    %c0_i32_6 = arith.constant 0 : i32
    %10 = arith.cmpi ne, %9, %c0_i32_6 : i32
    scf.if %10 {
      %cst_7 = arith.constant 0.000000e+00 : f32
      %11 = vector.broadcast %cst_7 : f32 to vector<16x1xf32>
      %c0_8 = arith.constant 0 : index
      %c0_9 = arith.constant 0 : index
      %c0_10 = arith.constant 0 : index
      %12 = vector.load %arg5[%c0_8, %c0_9, %c0_10] : memref<1x16x64xf32, #tpu.memory_space<vmem>>, vector<1x16x64xf32>
      %13 = vector.shape_cast %12 : vector<1x16x64xf32> to vector<16x64xf32>
      %cst_11 = arith.constant dense<0.000000e+00> : vector<16xf32>
      %14 = vector.multi_reduction <add>, %13, %cst_11 [1] : vector<16x64xf32> to vector<16xf32>
      %15 = vector.shape_cast %14 : vector<16xf32> to vector<16x1xf32>
      %16 = arith.addf %11, %15 : vector<16x1xf32>
      %cst_12 = arith.constant 1.562500e-02 : f32
      %17 = vector.broadcast %cst_12 : f32 to vector<16x1xf32>
      %18 = arith.mulf %16, %17 : vector<16x1xf32>
      %cst_13 = arith.constant 0.000000e+00 : f32
      %19 = vector.broadcast %cst_13 : f32 to vector<16x1xf32>
      %c0_14 = arith.constant 0 : index
      %c0_15 = arith.constant 0 : index
      %c0_16 = arith.constant 0 : index
      %20 = vector.load %arg5[%c0_14, %c0_15, %c0_16] : memref<1x16x64xf32, #tpu.memory_space<vmem>>, vector<1x16x64xf32>
      %21 = vector.shape_cast %20 : vector<1x16x64xf32> to vector<16x64xf32>
      %22 = vector.broadcast %18 : vector<16x1xf32> to vector<16x64xf32>
      %23 = arith.subf %21, %22 : vector<16x64xf32>
      %24 = arith.mulf %23, %23 : vector<16x64xf32>
      %cst_17 = arith.constant dense<0.000000e+00> : vector<16xf32>
      %25 = vector.multi_reduction <add>, %24, %cst_17 [1] : vector<16x64xf32> to vector<16xf32>
      %26 = vector.shape_cast %25 : vector<16xf32> to vector<16x1xf32>
      %27 = arith.addf %19, %26 : vector<16x1xf32>
      %cst_18 = arith.constant 1.562500e-02 : f32
      %28 = vector.broadcast %cst_18 : f32 to vector<16x1xf32>
      %29 = arith.mulf %27, %28 : vector<16x1xf32>
      %cst_19 = arith.constant 9.99999974E-6 : f32
      %30 = vector.broadcast %cst_19 : f32 to vector<16x1xf32>
      %31 = arith.addf %29, %30 : vector<16x1xf32>
      %32 = math.rsqrt %31 : vector<16x1xf32>
      %c0_20 = arith.constant 0 : index
      %c0_21 = arith.constant 0 : index
      %c0_22 = arith.constant 0 : index
      %33 = vector.load %arg5[%c0_20, %c0_21, %c0_22] : memref<1x16x64xf32, #tpu.memory_space<vmem>>, vector<1x16x64xf32>
      %34 = vector.shape_cast %33 : vector<1x16x64xf32> to vector<16x64xf32>
      %35 = vector.broadcast %18 : vector<16x1xf32> to vector<16x64xf32>
      %36 = arith.subf %34, %35 : vector<16x64xf32>
      %37 = vector.broadcast %32 : vector<16x1xf32> to vector<16x64xf32>
      %38 = arith.mulf %36, %37 : vector<16x64xf32>
      %cst_23 = arith.constant 0.000000e+00 : f32
      %39 = vector.broadcast %cst_23 : f32 to vector<16x64xf32>
      %40 = arith.maximumf %38, %39 : vector<16x64xf32>
      %41 = arith.truncf %40 : vector<16x64xf32> to vector<16x64xbf16>
      %c0_24 = arith.constant 0 : index
      %c0_25 = arith.constant 0 : index
      %c0_26 = arith.constant 0 : index
      %42 = vector.load %arg4[%c0_24, %c0_25, %c0_26] : memref<1x16x64xbf16, #tpu.memory_space<vmem>>, vector<1x16x64xbf16>
      %43 = vector.shape_cast %42 : vector<1x16x64xbf16> to vector<16x64xbf16>
      %44 = vector.shape_cast %41 : vector<16x64xbf16> to vector<1x16x64xbf16>
      tpu.vector_store %arg4[%c0_24, %c0_25, %c0_26], %44 {strides = array<i32>} : memref<1x16x64xbf16, #tpu.memory_space<vmem>>, vector<1x16x64xbf16>,
    } else {
    }
    return
  }
  func.func @transform_0(%arg0: i32, %arg1: i32) -> (i32, i32, i32) {
    %c0_i32 = arith.constant 0 : i32
    %c0_i32_0 = arith.constant 0 : i32
    return %arg0, %c0_i32, %arg1 : i32, i32, i32
  }
  func.func @transform_1(%arg0: i32, %arg1: i32) -> (i32, i32) {
    %c0_i32 = arith.constant 0 : i32
    %c0_i32_0 = arith.constant 0 : i32
    %c0_i32_1 = arith.constant 0 : i32
    return %c0_i32, %c0_i32_0 : i32, i32
  }
  func.func @transform_2(%arg0: i32, %arg1: i32) -> (i32, i32, i32) {
    %c0_i32 = arith.constant 0 : i32
    %c0_i32_0 = arith.constant 0 : i32
    %c0_i32_1 = arith.constant 0 : i32
    return %arg0, %c0_i32, %c0_i32_0 : i32, i32, i32
  }
}

module attributes {stable_mosaic.version = 11 : i64} {
  func.func @_conv_fused_kernel(%arg0: i32, %arg1: i32, %arg2: memref<1x144x64xbf16, #tpu.memory_space<vmem>>, %arg3: memref<16x144xbf16, #tpu.memory_space<vmem>>, %arg4: memref<1x16x64xbf16, #tpu.memory_space<vmem>>, %arg5: memref<1x16x64xf32, #tpu.memory_space<vmem>>) attributes {dimension_semantics = [#tpu.dimension_semantics<parallel>, #tpu.dimension_semantics<arbitrary>], iteration_bounds = array<i64: 2, 1>, scalar_prefetch = 0 : i64, scratch_operands = 1 : i64, tpu.core_type = #tpu.core_type<tc>, window_params = [{transform_indices = @transform_0, window_bounds = array<i64: 1, 144, 64>}, {pipeline_mode = #tpu.pipeline_mode<synchronous>, transform_indices = @transform_1, window_bounds = array<i64: 16, 144>}, {transform_indices = @transform_2, window_bounds = array<i64: 1, 16, 64>}]} {
    %c0 = arith.constant 0 : index
    %c0_0 = arith.constant 0 : index
    %0 = vector.load %arg3[%c0, %c0_0] : memref<16x144xbf16, #tpu.memory_space<vmem>>, vector<16x144xbf16>
    %c0_1 = arith.constant 0 : index
    %c0_2 = arith.constant 0 : index
    %c0_3 = arith.constant 0 : index
    %1 = vector.load %arg2[%c0_1, %c0_2, %c0_3] : memref<1x144x64xbf16, #tpu.memory_space<vmem>>, vector<1x144x64xbf16>
    %2 = vector.shape_cast %1 : vector<1x144x64xbf16> to vector<144x64xbf16>
    %cst = arith.constant dense<0.000000e+00> : vector<16x64xf32>
    %3 = tpu.matmul %0, %2, %cst {dimension_numbers = #tpu.dot_dimension_numbers<[1], [0], [0], [1], [0, 0, 1, 1], [], []>} : vector<16x144xbf16>, vector<144x64xbf16>, vector<16x64xf32> -> vector<16x64xf32>
    %4 = arith.index_cast %arg1 : i32 to index
    %c0_4 = arith.constant 0 : index
    %c0_5 = arith.constant 0 : index
    %5 = vector.load %arg5[%4, %c0_4, %c0_5] : memref<1x16x64xf32, #tpu.memory_space<vmem>>, vector<1x16x64xf32>
    %6 = vector.shape_cast %5 : vector<1x16x64xf32> to vector<16x64xf32>
    %7 = vector.shape_cast %3 : vector<16x64xf32> to vector<1x16x64xf32>
    tpu.vector_store %arg5[%4, %c0_4, %c0_5], %7 {strides = array<i32>} : memref<1x16x64xf32, #tpu.memory_space<vmem>>, vector<1x16x64xf32>,
    %c0_i32 = arith.constant 0 : i32
    %8 = arith.cmpi eq, %arg1, %c0_i32 : i32
    %9 = arith.extui %8 : i1 to i32
    %c0_i32_6 = arith.constant 0 : i32
    %10 = arith.cmpi ne, %9, %c0_i32_6 : i32
    scf.if %10 {
      %cst_7 = arith.constant 0.000000e+00 : f32
      %11 = vector.broadcast %cst_7 : f32 to vector<16x1xf32>
      %c0_8 = arith.constant 0 : index
      %c0_9 = arith.constant 0 : index
      %c0_10 = arith.constant 0 : index
      %12 = vector.load %arg5[%c0_8, %c0_9, %c0_10] : memref<1x16x64xf32, #tpu.memory_space<vmem>>, vector<1x16x64xf32>
      %13 = vector.shape_cast %12 : vector<1x16x64xf32> to vector<16x64xf32>
      %cst_11 = arith.constant dense<0.000000e+00> : vector<16xf32>
      %14 = vector.multi_reduction <add>, %13, %cst_11 [1] : vector<16x64xf32> to vector<16xf32>
      %15 = vector.shape_cast %14 : vector<16xf32> to vector<16x1xf32>
      %16 = arith.addf %11, %15 : vector<16x1xf32>
      %cst_12 = arith.constant 1.562500e-02 : f32
      %17 = vector.broadcast %cst_12 : f32 to vector<16x1xf32>
      %18 = arith.mulf %16, %17 : vector<16x1xf32>
      %cst_13 = arith.constant 0.000000e+00 : f32
      %19 = vector.broadcast %cst_13 : f32 to vector<16x1xf32>
      %c0_14 = arith.constant 0 : index
      %c0_15 = arith.constant 0 : index
      %c0_16 = arith.constant 0 : index
      %20 = vector.load %arg5[%c0_14, %c0_15, %c0_16] : memref<1x16x64xf32, #tpu.memory_space<vmem>>, vector<1x16x64xf32>
      %21 = vector.shape_cast %20 : vector<1x16x64xf32> to vector<16x64xf32>
      %22 = vector.broadcast %18 : vector<16x1xf32> to vector<16x64xf32>
      %23 = arith.subf %21, %22 : vector<16x64xf32>
      %24 = arith.mulf %23, %23 : vector<16x64xf32>
      %cst_17 = arith.constant dense<0.000000e+00> : vector<16xf32>
      %25 = vector.multi_reduction <add>, %24, %cst_17 [1] : vector<16x64xf32> to vector<16xf32>
      %26 = vector.shape_cast %25 : vector<16xf32> to vector<16x1xf32>
      %27 = arith.addf %19, %26 : vector<16x1xf32>
      %cst_18 = arith.constant 1.562500e-02 : f32
      %28 = vector.broadcast %cst_18 : f32 to vector<16x1xf32>
      %29 = arith.mulf %27, %28 : vector<16x1xf32>
      %cst_19 = arith.constant 9.99999974E-6 : f32
      %30 = vector.broadcast %cst_19 : f32 to vector<16x1xf32>
      %31 = arith.addf %29, %30 : vector<16x1xf32>
      %32 = math.rsqrt %31 : vector<16x1xf32>
      %c0_20 = arith.constant 0 : index
      %c0_21 = arith.constant 0 : index
      %c0_22 = arith.constant 0 : index
      %33 = vector.load %arg5[%c0_20, %c0_21, %c0_22] : memref<1x16x64xf32, #tpu.memory_space<vmem>>, vector<1x16x64xf32>
      %34 = vector.shape_cast %33 : vector<1x16x64xf32> to vector<16x64xf32>
      %35 = vector.broadcast %18 : vector<16x1xf32> to vector<16x64xf32>
      %36 = arith.subf %34, %35 : vector<16x64xf32>
      %37 = vector.broadcast %32 : vector<16x1xf32> to vector<16x64xf32>
      %38 = arith.mulf %36, %37 : vector<16x64xf32>
      %cst_23 = arith.constant 0.000000e+00 : f32
      %39 = vector.broadcast %cst_23 : f32 to vector<16x64xf32>
      %40 = arith.cmpf oge, %38, %39 : vector<16x64xf32>
      %cst_24 = arith.constant 1.000000e-01 : f32
      %41 = vector.broadcast %cst_24 : f32 to vector<16x64xf32>
      %42 = arith.mulf %41, %38 : vector<16x64xf32>
      %43 = arith.select %40, %38, %42 : vector<16x64xi1>, vector<16x64xf32>
      %44 = arith.truncf %43 : vector<16x64xf32> to vector<16x64xbf16>
      %c0_25 = arith.constant 0 : index
      %c0_26 = arith.constant 0 : index
      %c0_27 = arith.constant 0 : index
      %45 = vector.load %arg4[%c0_25, %c0_26, %c0_27] : memref<1x16x64xbf16, #tpu.memory_space<vmem>>, vector<1x16x64xbf16>
      %46 = vector.shape_cast %45 : vector<1x16x64xbf16> to vector<16x64xbf16>
      %47 = vector.shape_cast %44 : vector<16x64xbf16> to vector<1x16x64xbf16>
      tpu.vector_store %arg4[%c0_25, %c0_26, %c0_27], %47 {strides = array<i32>} : memref<1x16x64xbf16, #tpu.memory_space<vmem>>, vector<1x16x64xbf16>,
    } else {
    }
    return
  }
  func.func @transform_0(%arg0: i32, %arg1: i32) -> (i32, i32, i32) {
    %c0_i32 = arith.constant 0 : i32
    %c0_i32_0 = arith.constant 0 : i32
    return %arg0, %c0_i32, %arg1 : i32, i32, i32
  }
  func.func @transform_1(%arg0: i32, %arg1: i32) -> (i32, i32) {
    %c0_i32 = arith.constant 0 : i32
    %c0_i32_0 = arith.constant 0 : i32
    %c0_i32_1 = arith.constant 0 : i32
    return %c0_i32, %c0_i32_0 : i32, i32
  }
  func.func @transform_2(%arg0: i32, %arg1: i32) -> (i32, i32, i32) {
    %c0_i32 = arith.constant 0 : i32
    %c0_i32_0 = arith.constant 0 : i32
    %c0_i32_1 = arith.constant 0 : i32
    return %arg0, %c0_i32, %c0_i32_0 : i32, i32, i32
  }
}

module attributes {stable_mosaic.version = 11 : i64} {
  func.func @_conv_fused_kernel(%arg0: i32, %arg1: i32, %arg2: memref<1x144x64xbf16, #tpu.memory_space<vmem>>, %arg3: memref<16x144xbf16, #tpu.memory_space<vmem>>, %arg4: memref<1x16x64xbf16, #tpu.memory_space<vmem>>, %arg5: memref<1x16x64xbf16, #tpu.memory_space<vmem>>, %arg6: memref<1x16x64xf32, #tpu.memory_space<vmem>>) attributes {dimension_semantics = [#tpu.dimension_semantics<parallel>, #tpu.dimension_semantics<arbitrary>], iteration_bounds = array<i64: 2, 1>, scalar_prefetch = 0 : i64, scratch_operands = 1 : i64, tpu.core_type = #tpu.core_type<tc>, window_params = [{transform_indices = @transform_0, window_bounds = array<i64: 1, 144, 64>}, {pipeline_mode = #tpu.pipeline_mode<synchronous>, transform_indices = @transform_1, window_bounds = array<i64: 16, 144>}, {transform_indices = @transform_2, window_bounds = array<i64: 1, 16, 64>}, {transform_indices = @transform_3, window_bounds = array<i64: 1, 16, 64>}]} {
    %c0 = arith.constant 0 : index
    %c0_0 = arith.constant 0 : index
    %0 = vector.load %arg3[%c0, %c0_0] : memref<16x144xbf16, #tpu.memory_space<vmem>>, vector<16x144xbf16>
    %c0_1 = arith.constant 0 : index
    %c0_2 = arith.constant 0 : index
    %c0_3 = arith.constant 0 : index
    %1 = vector.load %arg2[%c0_1, %c0_2, %c0_3] : memref<1x144x64xbf16, #tpu.memory_space<vmem>>, vector<1x144x64xbf16>
    %2 = vector.shape_cast %1 : vector<1x144x64xbf16> to vector<144x64xbf16>
    %cst = arith.constant dense<0.000000e+00> : vector<16x64xf32>
    %3 = tpu.matmul %0, %2, %cst {dimension_numbers = #tpu.dot_dimension_numbers<[1], [0], [0], [1], [0, 0, 1, 1], [], []>} : vector<16x144xbf16>, vector<144x64xbf16>, vector<16x64xf32> -> vector<16x64xf32>
    %4 = arith.index_cast %arg1 : i32 to index
    %c0_4 = arith.constant 0 : index
    %c0_5 = arith.constant 0 : index
    %5 = vector.load %arg6[%4, %c0_4, %c0_5] : memref<1x16x64xf32, #tpu.memory_space<vmem>>, vector<1x16x64xf32>
    %6 = vector.shape_cast %5 : vector<1x16x64xf32> to vector<16x64xf32>
    %7 = vector.shape_cast %3 : vector<16x64xf32> to vector<1x16x64xf32>
    tpu.vector_store %arg6[%4, %c0_4, %c0_5], %7 {strides = array<i32>} : memref<1x16x64xf32, #tpu.memory_space<vmem>>, vector<1x16x64xf32>,
    %c0_i32 = arith.constant 0 : i32
    %8 = arith.cmpi eq, %arg1, %c0_i32 : i32
    %9 = arith.extui %8 : i1 to i32
    %c0_i32_6 = arith.constant 0 : i32
    %10 = arith.cmpi ne, %9, %c0_i32_6 : i32
    scf.if %10 {
      %cst_7 = arith.constant 0.000000e+00 : f32
      %11 = vector.broadcast %cst_7 : f32 to vector<16x1xf32>
      %c0_8 = arith.constant 0 : index
      %c0_9 = arith.constant 0 : index
      %c0_10 = arith.constant 0 : index
      %12 = vector.load %arg6[%c0_8, %c0_9, %c0_10] : memref<1x16x64xf32, #tpu.memory_space<vmem>>, vector<1x16x64xf32>
      %13 = vector.shape_cast %12 : vector<1x16x64xf32> to vector<16x64xf32>
      %cst_11 = arith.constant dense<0.000000e+00> : vector<16xf32>
      %14 = vector.multi_reduction <add>, %13, %cst_11 [1] : vector<16x64xf32> to vector<16xf32>
      %15 = vector.shape_cast %14 : vector<16xf32> to vector<16x1xf32>
      %16 = arith.addf %11, %15 : vector<16x1xf32>
      %cst_12 = arith.constant 1.562500e-02 : f32
      %17 = vector.broadcast %cst_12 : f32 to vector<16x1xf32>
      %18 = arith.mulf %16, %17 : vector<16x1xf32>
      %cst_13 = arith.constant 0.000000e+00 : f32
      %19 = vector.broadcast %cst_13 : f32 to vector<16x1xf32>
      %c0_14 = arith.constant 0 : index
      %c0_15 = arith.constant 0 : index
      %c0_16 = arith.constant 0 : index
      %20 = vector.load %arg6[%c0_14, %c0_15, %c0_16] : memref<1x16x64xf32, #tpu.memory_space<vmem>>, vector<1x16x64xf32>
      %21 = vector.shape_cast %20 : vector<1x16x64xf32> to vector<16x64xf32>
      %22 = vector.broadcast %18 : vector<16x1xf32> to vector<16x64xf32>
      %23 = arith.subf %21, %22 : vector<16x64xf32>
      %24 = arith.mulf %23, %23 : vector<16x64xf32>
      %cst_17 = arith.constant dense<0.000000e+00> : vector<16xf32>
      %25 = vector.multi_reduction <add>, %24, %cst_17 [1] : vector<16x64xf32> to vector<16xf32>
      %26 = vector.shape_cast %25 : vector<16xf32> to vector<16x1xf32>
      %27 = arith.addf %19, %26 : vector<16x1xf32>
      %cst_18 = arith.constant 1.562500e-02 : f32
      %28 = vector.broadcast %cst_18 : f32 to vector<16x1xf32>
      %29 = arith.mulf %27, %28 : vector<16x1xf32>
      %cst_19 = arith.constant 9.99999974E-6 : f32
      %30 = vector.broadcast %cst_19 : f32 to vector<16x1xf32>
      %31 = arith.addf %29, %30 : vector<16x1xf32>
      %32 = math.rsqrt %31 : vector<16x1xf32>
      %c0_20 = arith.constant 0 : index
      %c0_21 = arith.constant 0 : index
      %c0_22 = arith.constant 0 : index
      %33 = vector.load %arg6[%c0_20, %c0_21, %c0_22] : memref<1x16x64xf32, #tpu.memory_space<vmem>>, vector<1x16x64xf32>
      %34 = vector.shape_cast %33 : vector<1x16x64xf32> to vector<16x64xf32>
      %35 = vector.broadcast %18 : vector<16x1xf32> to vector<16x64xf32>
      %36 = arith.subf %34, %35 : vector<16x64xf32>
      %37 = vector.broadcast %32 : vector<16x1xf32> to vector<16x64xf32>
      %38 = arith.mulf %36, %37 : vector<16x64xf32>
      %c0_23 = arith.constant 0 : index
      %c0_24 = arith.constant 0 : index
      %c0_25 = arith.constant 0 : index
      %39 = vector.load %arg4[%c0_23, %c0_24, %c0_25] : memref<1x16x64xbf16, #tpu.memory_space<vmem>>, vector<1x16x64xbf16>
      %40 = vector.shape_cast %39 : vector<1x16x64xbf16> to vector<16x64xbf16>
      %41 = arith.extf %40 : vector<16x64xbf16> to vector<16x64xf32>
      %42 = arith.addf %38, %41 : vector<16x64xf32>
      %43 = arith.truncf %42 : vector<16x64xf32> to vector<16x64xbf16>
      %c0_26 = arith.constant 0 : index
      %c0_27 = arith.constant 0 : index
      %c0_28 = arith.constant 0 : index
      %44 = vector.load %arg5[%c0_26, %c0_27, %c0_28] : memref<1x16x64xbf16, #tpu.memory_space<vmem>>, vector<1x16x64xbf16>
      %45 = vector.shape_cast %44 : vector<1x16x64xbf16> to vector<16x64xbf16>
      %46 = vector.shape_cast %43 : vector<16x64xbf16> to vector<1x16x64xbf16>
      tpu.vector_store %arg5[%c0_26, %c0_27, %c0_28], %46 {strides = array<i32>} : memref<1x16x64xbf16, #tpu.memory_space<vmem>>, vector<1x16x64xbf16>,
    } else {
    }
    return
  }
  func.func @transform_0(%arg0: i32, %arg1: i32) -> (i32, i32, i32) {
    %c0_i32 = arith.constant 0 : i32
    %c0_i32_0 = arith.constant 0 : i32
    return %arg0, %c0_i32, %arg1 : i32, i32, i32
  }
  func.func @transform_1(%arg0: i32, %arg1: i32) -> (i32, i32) {
    %c0_i32 = arith.constant 0 : i32
    %c0_i32_0 = arith.constant 0 : i32
    %c0_i32_1 = arith.constant 0 : i32
    return %c0_i32, %c0_i32_0 : i32, i32
  }
  func.func @transform_2(%arg0: i32, %arg1: i32) -> (i32, i32, i32) {
    %c0_i32 = arith.constant 0 : i32
    %c0_i32_0 = arith.constant 0 : i32
    %c0_i32_1 = arith.constant 0 : i32
    return %arg0, %c0_i32, %c0_i32_0 : i32, i32, i32
  }
  func.func @transform_3(%arg0: i32, %arg1: i32) -> (i32, i32, i32) {
    %c0_i32 = arith.constant 0 : i32
    %c0_i32_0 = arith.constant 0 : i32
    %c0_i32_1 = arith.constant 0 : i32
    return %arg0, %c0_i32, %c0_i32_0 : i32, i32, i32
  }
}

</mosaic_0001>

<llo_original>
// kernel: intrinsic_encoder_forward.7
$region0: #{intrinsic_encoder_forward.7}
  #allocation0 [shape = 'u32[]', space=smem, size = 0x4, offset = 0x4, fixed_abs, tag = 'smem constant byte address 0x4 - core index']
  #allocation1 [shape = 'u32[72,128]{1,0:T(1,128)}', space=vmem, size = 0x9000, scoped, tag = 'internal scratch']
  #allocation2 [shape = 'f32[2,8,128]{2,1,0:T(8,128)}', space=vmem, size = 0x2000, scoped, tag = 'scratch operand']
  %s0 = inlined_call_operand.vmem [shape: bf16[2,27,256], index: 0, kind: input, shape index: {}]
  %s1 = inlined_call_operand.vmem [shape: bf16[8,27], index: 1, kind: input, shape index: {}]
  %s2 = inlined_call_operand.vmem [shape: bf16[2,8,256], index: 2, kind: output, shape index: {}]
  %s3 = sld [smem:[#allocation0]]
  $region86: #{intrinsic_encoder_forward.7} parent=0
    _
  %s5 = ssub.s32 1, %s3
  %s6 = scalar_select 0, %s5, %s3
  $region1: #{intrinsic_encoder_forward.7} parent=0
    #allocation3 [shape = 'u8[16384]{0}', space=vmem, size = 0x4000, scoped, tag = 'input window, operand 0']
    loop: start=0, step=1, limit=6
    $region2: #{intrinsic_encoder_forward.7} parent=1 // loop_pre_header
      _
    $region3: #{intrinsic_encoder_forward.7} parent=1 // loop_header
      %s8 = sphi 0, %s12
      %p9 = scmp.ge.s32.totalorder %s8, 6
      %s15 = sphi 0, %s27
      %s16 = sphi 0, %s23
      %s17 = sphi 0, %s15
      %s18 = sphi 0, %s16
      %s19 = sphi 0, %s17
      %s20 = sphi 0, %s18
      %s32 = sphi 0, %s34
      %s35 = sphi 0, %s32
      %s36 = sphi 0, %s35
      %s52 = sphi 0, %s36
      %s56 = sphi 0, %s56
      %s58 = sphi 0, %s56
      %s59 = sphi 0, %s58
      %s73 = sphi 0, %s59
      %s79 = sphi 0, %s81
      %s82 = sphi 0, %s79
      %s83 = sphi 0, %s82
      %s99 = sphi 0, %s83
    $region4: #{intrinsic_encoder_forward.7} parent=1 // loop_header_branch
      %11 = sbr.rel (%p9) target = $region8
    $region5: #{intrinsic_encoder_forward.7} parent=1 // loop_body
      %s13 = ssub.s32 %s8, 1
      %s14 = ssub.s32 %s8, 2
      %s21 = sadd.s32 1, %s16
      %p22 = scmp.ge.s32.totalorder %s21, 2
      %s23 = scalar_select %p22, 0, %s21
      %s24 = sadd.s32 1, %s15
      %s25 = scalar_select %p22, %s24, %s15
      %p26 = scmp.ge.s32.totalorder %s25, 2
      %s27 = scalar_select %p26, 0, %s25
      %s28 = ssub.s32 %s15, %s27
      %s29 = ssub.s32 %s16, %s23
      %s30 = sor.u32 %s28, %s29
      %p31 = scmp.eq.s32.totalorder %s30, 0
      %s33 = sadd.s32 %s32, 1
      %s34 = scalar_select %p31, %s32, %s33
      %p37 = pneg %p31
      %p38 = scmp.eq.s32.totalorder %s8, 3
      %p39 = por %p37, %p38
      %p40 = scmp.ne.s32.totalorder %s32, %s35
      %p41 = scmp.eq.s32.totalorder %s8, 0
      %p42 = por %p40, %p41
      %p43 = scmp.ne.s32.totalorder %s32, %s35
      %p44 = scmp.eq.s32.totalorder %s13, 3
      %p45 = por %p43, %p44
      %p46 = scmp.ne.s32.totalorder %s35, %s36
      %p47 = scmp.eq.s32.totalorder %s13, 0
      %p48 = por %p46, %p47
      %p49 = scmp.ne.s32.totalorder %s35, %s36
      %p50 = scmp.eq.s32.totalorder %s14, 3
      %p51 = por %p49, %p50
      %p53 = scmp.ne.s32.totalorder %s36, %s52
      %p54 = scmp.eq.s32.totalorder %s14, 0
      %p55 = por %p53, %p54
      %s57 = sadd.s32 %s56, 1
      %p60 = scmp.eq.s32.totalorder %s8, 3
      %p61 = scmp.ne.s32.totalorder %s56, %s58
      %p62 = scmp.eq.s32.totalorder %s8, 0
      %p63 = por %p61, %p62
      %p64 = scmp.ne.s32.totalorder %s56, %s58
      %p65 = scmp.eq.s32.totalorder %s13, 3
      %p66 = por %p64, %p65
      %p67 = scmp.ne.s32.totalorder %s58, %s59
      %p68 = scmp.eq.s32.totalorder %s13, 0
      %p69 = por %p67, %p68
      %p70 = scmp.ne.s32.totalorder %s58, %s59
      %p71 = scmp.eq.s32.totalorder %s14, 3
      %p72 = por %p70, %p71
      %p74 = scmp.ne.s32.totalorder %s59, %s73
      %p75 = scmp.eq.s32.totalorder %s14, 0
      %p76 = por %p74, %p75
      %s77 = ssub.s32 %s15, %s27
      %p78 = scmp.eq.s32.totalorder %s77, 0
      %s80 = sadd.s32 %s79, 1
      %s81 = scalar_select %p78, %s79, %s80
      %p84 = pneg %p78
      %p85 = scmp.eq.s32.totalorder %s8, 3
      %p86 = por %p84, %p85
      %p87 = scmp.ne.s32.totalorder %s79, %s82
      %p88 = scmp.eq.s32.totalorder %s8, 0
      %p89 = por %p87, %p88
      %p90 = scmp.ne.s32.totalorder %s79, %s82
      %p91 = scmp.eq.s32.totalorder %s13, 3
      %p92 = por %p90, %p91
      %p93 = scmp.ne.s32.totalorder %s82, %s83
      %p94 = scmp.eq.s32.totalorder %s13, 0
      %p95 = por %p93, %p94
      %p96 = scmp.ne.s32.totalorder %s82, %s83
      %p97 = scmp.eq.s32.totalorder %s14, 3
      %p98 = por %p96, %p97
      %p100 = scmp.ne.s32.totalorder %s83, %s99
      %p101 = scmp.eq.s32.totalorder %s14, 0
      %p102 = por %p100, %p101
      %p103 = scmp.le.s32.totalorder 1, %s8
      %p104 = scmp.lt.s32.totalorder %s8, 5
      %p105 = pnand %p103, %p104
      %p106 = pneg %p105
      // Predicated region
      $region9: #{intrinsic_encoder_forward.7} parent=5 // pred_check
        _
      $region10: #{intrinsic_encoder_forward.7} parent=5 // pred_check_branch
        %108 = sbr.rel (%p105) target = $region12
      $region11: #{intrinsic_encoder_forward.7} parent=5 // pred_region
        %s109 = ssub.s32 %s8, 1
        // Predicated region
        $region13: #{intrinsic_encoder_forward.7} parent=11 // pred_check
          %p110 = pneg %p69
        $region14: #{intrinsic_encoder_forward.7} parent=11 // pred_check_branch
          %112 = sbr.rel (%p110) target = $region16
        $region15: #{intrinsic_encoder_forward.7} parent=11 // pred_region
          _
        $region16: #{intrinsic_encoder_forward.7} parent=11 // pred_fallthru
          _
      $region12: #{intrinsic_encoder_forward.7} parent=5 // pred_fallthru
        _
      %p113 = scmp.lt.s32.totalorder %s8, 4
      // Predicated region
      $region17: #{intrinsic_encoder_forward.7} parent=5 // pred_check
        %p114 = pneg %p113
      $region18: #{intrinsic_encoder_forward.7} parent=5 // pred_check_branch
        %116 = sbr.rel (%p114) target = $region20
      $region19: #{intrinsic_encoder_forward.7} parent=5 // pred_region
        // Predicated region
        $region21: #{intrinsic_encoder_forward.7} parent=19 // pred_check
          %p117 = pneg %p42
        $region22: #{intrinsic_encoder_forward.7} parent=19 // pred_check_branch
          %119 = sbr.rel (%p117) target = $region24
        $region23: #{intrinsic_encoder_forward.7} parent=19 // pred_region
          %s120 = sand.u32 %s32, 1
          %s121 = sand.u32 %s32, 1
          %s122 = smul.addr %s121, 16
          %s123 = scalar_lea.vmem [#allocation3], %s122
          %s124 = smul.addr %s15, 8
          %s125 = sadd.s32 %s16, %s124
          %s126 = smul.addr %s125, 4
          %s127 = scalar_lea.vmem %s0, %s126
          // Predicated region
          $region25: #{intrinsic_encoder_forward.7} parent=23 // pred_check
            _
          $region26: #{intrinsic_encoder_forward.7} parent=23 // pred_check_branch
            %129 = sbr.rel (0) target = $region28
          $region27: #{intrinsic_encoder_forward.7} parent=23 // pred_region
            // Predicated region
            $region29: #{intrinsic_encoder_forward.7} parent=27 // pred_check
              _
            $region30: #{intrinsic_encoder_forward.7} parent=27 // pred_check_branch
              %131 = sbr.rel target = $region32
            $region31: #{intrinsic_encoder_forward.7} parent=27 // pred_region
              // Predicated region
              $region44: #{intrinsic_encoder_forward.7} parent=31 // pred_check
                _
              $region45: #{intrinsic_encoder_forward.7} parent=31 // pred_check_branch
                %153 = sbr.rel (0) target = $region47
              $region46: #{intrinsic_encoder_forward.7} parent=31 // pred_region
                loop: start=0, step=1, limit=1
                $region48: #{intrinsic_encoder_forward.7} parent=46 // loop_pre_header
                  _
                $region49: #{intrinsic_encoder_forward.7} parent=46 // loop_header
                  %s155 = sphi 0, %s159
                  %p156 = scmp.ge.s32.totalorder %s155, 1
                  %s160 = sphi %s127, %s127
                  %s161 = sphi %s123, %s123
                $region50: #{intrinsic_encoder_forward.7} parent=46 // loop_header_branch
                  %158 = sbr.rel (%p156) target = $region54
                $region51: #{intrinsic_encoder_forward.7} parent=46 // loop_body
                  _
                $region52: #{intrinsic_encoder_forward.7} parent=46 // loop_footer
                  %s159 = sadd.s32 1, %s155
                $region53: #{intrinsic_encoder_forward.7} parent=46 // loop_footer_branch
                  %154 = sbr.rel target = $region49
                $region54: #{intrinsic_encoder_forward.7} parent=46 // loop_exit
                  _
                %s163 = ssub.s32 16, 1
                loop: start=0, step=1, limit=1
                $region55: #{intrinsic_encoder_forward.7} parent=46 // loop_pre_header
                  _
                $region56: #{intrinsic_encoder_forward.7} parent=46 // loop_header
                  %s165 = sphi 0, %s169
                  %p166 = scmp.ge.s32.totalorder %s165, 1
                  %s170 = sphi %s127, %s127
                  %s171 = sphi %s123, %s123
                $region57: #{intrinsic_encoder_forward.7} parent=46 // loop_header_branch
                  %168 = sbr.rel (%p166) target = $region61
                $region58: #{intrinsic_encoder_forward.7} parent=46 // loop_body
                  %v172 = vld [vmem:[%s170] sm:%s163]
                  %173 = vst [vmem:[%s171] sm:%s163] %v172
                  %v174 = vld [vmem:[%s170 + $0x8] sm:%s163]
                  %175 = vst [vmem:[%s171 + $0x4] sm:%s163] %v174
                  %v176 = vld [vmem:[%s170 + $0x10] sm:%s163]
                  %177 = vst [vmem:[%s171 + $0x8] sm:%s163] %v176
                  %v178 = vld [vmem:[%s170 + $0x18] sm:%s163]
                  %179 = vst [vmem:[%s171 + $0xc] sm:%s163] %v178
                $region59: #{intrinsic_encoder_forward.7} parent=46 // loop_footer
                  %s169 = sadd.s32 1, %s165
                $region60: #{intrinsic_encoder_forward.7} parent=46 // loop_footer_branch
                  %164 = sbr.rel target = $region56
                $region61: #{intrinsic_encoder_forward.7} parent=46 // loop_exit
                  _
              $region47: #{intrinsic_encoder_forward.7} parent=31 // pred_fallthru
                _
            $region32: #{intrinsic_encoder_forward.7} parent=27 // pred_fallthru
              _
            // Predicated region
            $region33: #{intrinsic_encoder_forward.7} parent=27 // pred_check
              _
            $region34: #{intrinsic_encoder_forward.7} parent=27 // pred_check_branch
              %133 = sbr.rel (0) target = $region36
            $region35: #{intrinsic_encoder_forward.7} parent=27 // pred_region
              %s135 = ssub.s32 16, 1
              loop: start=0, step=1, limit=1
              $region37: #{intrinsic_encoder_forward.7} parent=35 // loop_pre_header
                _
              $region38: #{intrinsic_encoder_forward.7} parent=35 // loop_header
                %s137 = sphi 0, %s141
                %p138 = scmp.ge.s32.totalorder %s137, 1
                %s142 = sphi %s127, %s127
                %s143 = sphi %s123, %s123
              $region39: #{intrinsic_encoder_forward.7} parent=35 // loop_header_branch
                %140 = sbr.rel (%p138) target = $region43
              $region40: #{intrinsic_encoder_forward.7} parent=35 // loop_body
                %v144 = vld [vmem:[%s142] sm:%s135]
                %145 = vst [vmem:[%s143] sm:%s135] %v144
                %v146 = vld [vmem:[%s142 + $0x8] sm:%s135]
                %147 = vst [vmem:[%s143 + $0x4] sm:%s135] %v146
                %v148 = vld [vmem:[%s142 + $0x10] sm:%s135]
                %149 = vst [vmem:[%s143 + $0x8] sm:%s135] %v148
                %v150 = vld [vmem:[%s142 + $0x18] sm:%s135]
                %151 = vst [vmem:[%s143 + $0xc] sm:%s135] %v150
              $region41: #{intrinsic_encoder_forward.7} parent=35 // loop_footer
                %s141 = sadd.s32 1, %s137
              $region42: #{intrinsic_encoder_forward.7} parent=35 // loop_footer_branch
                %136 = sbr.rel target = $region38
              $region43: #{intrinsic_encoder_forward.7} parent=35 // loop_exit
                _
            $region36: #{intrinsic_encoder_forward.7} parent=27 // pred_fallthru
              _
          $region28: #{intrinsic_encoder_forward.7} parent=23 // pred_fallthru
            _
          %180 = vnop
        $region24: #{intrinsic_encoder_forward.7} parent=19 // pred_fallthru
          _
      $region20: #{intrinsic_encoder_forward.7} parent=5 // pred_fallthru
        _
      %p181 = scmp.le.s32.totalorder 1, %s8
      %p182 = scmp.lt.s32.totalorder %s8, 5
      %p183 = pnand %p181, %p182
      %p184 = pneg %p183
      // Predicated region
      $region62: #{intrinsic_encoder_forward.7} parent=5 // pred_check
        _
      $region63: #{intrinsic_encoder_forward.7} parent=5 // pred_check_branch
        %186 = sbr.rel (%p183) target = $region65
      $region64: #{intrinsic_encoder_forward.7} parent=5 // pred_region
        %s187 = ssub.s32 %s8, 1
        %s188 = sand.u32 %s35, 1
        %s189 = sand.u32 %s35, 1
        %s190 = smul.addr %s189, 16
        %s191 = scalar_lea.vmem [#allocation3], %s190
        // Predicated region
        $region66: #{intrinsic_encoder_forward.7} parent=64 // pred_check
          %p192 = pneg %p48
        $region67: #{intrinsic_encoder_forward.7} parent=64 // pred_check_branch
          %194 = sbr.rel (%p192) target = $region69
        $region68: #{intrinsic_encoder_forward.7} parent=64 // pred_region
          _
        $region69: #{intrinsic_encoder_forward.7} parent=64 // pred_fallthru
          _
        %s195 = sand.u32 %s35, 1
        %s196 = sand.u32 %s35, 1
        %s197 = smul.addr %s196, 16
        %s198 = scalar_lea.vmem [#allocation3], %s197
        %p199 = pneg %p48
        %p200 = pneg %p45
        %p201 = pneg %p69
        %p202 = pneg %p66
        %p203 = pneg %p95
        %p204 = pneg %p92
        %p205 = scmp.lt.s32.totalorder %s17, 1
        %s206 = scalar_select %p205, %s17, 1
        %s207 = smul.addr %s206, 2
        %s208 = smul.addr %s207, 4
        %s209 = scalar_lea.vmem %s2, %s208
        %p210 = scmp.lt.s32.totalorder %s17, 1
        %s211 = scalar_select %p210, %s17, 1
        %s212 = smul.addr %s211, 2
        %s213 = smul.addr %s212, 4
        %s214 = scalar_lea.vmem %s2, %s213
        %v216 = vld [vmem:[%s1] sm:$0xf]
        %v217 = vld [vmem:[%s191] sm:$0xf]
        %v218 = vld [vmem:[%s191 + $0x4] sm:$0xf]
        %v219 = vld [vmem:[%s191 + $0x8] sm:$0xf]
        %v220 = vld [vmem:[%s191 + $0xc] sm:$0x3]
        %v225 = vunpack.c.l.b16 %v217
        %v226 = vunpack.c.l.b16 %v218
        %v227 = vunpack.c.l.b16 %v219
        %v228 = vunpack.c.l.b16 %v220
        %v229 = vpack.c.b16 %v226, %v225
        %v230 = vpack.c.b16 %v228, %v227
        %vm232 = vcmask 220160
        %v234 = vsel %vm232, %v216, 0
        %vm236 = vcmask 1044480
        %vm237 = vcmask 1045504
        %v238 = vsel %vm236, 4294967295, 65535
        %v239 = vsel %vm237, %v238, 0
        %v241 = vand.u32 %v230, %v239
        %243 = vmatpush.bf16.msra.mxu0 0
        %244 = vmatpush.bf16.msra.mxu0 0
        %245 = vmatpush.bf16.msra.mxu0 0
        %246 = vmatpush.bf16.msra.mxu0 0
        %247 = vmatpush.bf16.msra.mxu0 0
        %248 = vmatpush.bf16.msra.mxu0 0
        %249 = vmatpush.bf16.msra.mxu0 %v241
        %250 = vmatpush.bf16.msra.mxu0 %v229
        %251 = vmatmul.bf16.gmra.mxu0 %v234
        %v252 = vpop.f32.mrf.mxu0
        %v253 = vadd.f32 0.0, %v252
        %v254 = vpop.f32.mrf.mxu0
        %255 = vdwg.mxu0
        %s256 = smul.u32 %s18, 8
        %s257 = scalar_lea.vmem [#allocation2], %s256
        %258 = vst [vmem:[%s257] sm:$0xff] %v253
        %p259 = scmp.eq.s32.totalorder %s18, 1
        // Predicated region
        $region70: #{intrinsic_encoder_forward.7} parent=64 // pred_check
          %p260 = pneg %p259
        $region71: #{intrinsic_encoder_forward.7} parent=64 // pred_check_branch
          %262 = sbr.rel (%p260) target = $region73
        $region72: #{intrinsic_encoder_forward.7} parent=64 // pred_region
          %v263 = vld [vmem:[#allocation2] sm:$0xff]
          %v264 = vpack.c.bf16 %v263, %v263
          %265 = vst [vmem:[%s214] sm:$0xf] %v264
          %s266 = scalar_lea.vmem [#allocation2], 8
          %v267 = vld [vmem:[%s266] sm:$0xff]
          %v268 = vpack.c.bf16 %v267, %v267
          %269 = vst [vmem:[%s214 + $0x4] sm:$0xf] %v268
        $region73: #{intrinsic_encoder_forward.7} parent=64 // pred_fallthru
          _
        %p270 = scmp.lt.s32.totalorder %s17, 1
        %s271 = scalar_select %p270, %s17, 1
        %s272 = smul.addr %s271, 2
        %s273 = smul.addr %s272, 4
        %s274 = scalar_lea.vmem %s2, %s273
        // Predicated region
        $region74: #{intrinsic_encoder_forward.7} parent=64 // pred_check
          %p275 = pneg %p92
        $region75: #{intrinsic_encoder_forward.7} parent=64 // pred_check_branch
          %277 = sbr.rel (%p275) target = $region77
        $region76: #{intrinsic_encoder_forward.7} parent=64 // pred_region
          _
        $region77: #{intrinsic_encoder_forward.7} parent=64 // pred_fallthru
          _
      $region65: #{intrinsic_encoder_forward.7} parent=5 // pred_fallthru
        _
      %p278 = scmp.le.s32.totalorder 2, %s8
      // Predicated region
      $region78: #{intrinsic_encoder_forward.7} parent=5 // pred_check
        %p279 = pneg %p278
      $region79: #{intrinsic_encoder_forward.7} parent=5 // pred_check_branch
        %281 = sbr.rel (%p279) target = $region81
      $region80: #{intrinsic_encoder_forward.7} parent=5 // pred_region
        %s282 = ssub.s32 %s8, 2
        // Predicated region
        $region82: #{intrinsic_encoder_forward.7} parent=80 // pred_check
          %p283 = pneg %p98
        $region83: #{intrinsic_encoder_forward.7} parent=80 // pred_check_branch
          %285 = sbr.rel (%p283) target = $region85
        $region84: #{intrinsic_encoder_forward.7} parent=80 // pred_region
          %p286 = scmp.lt.s32.totalorder %s19, 1
          %s287 = scalar_select %p286, %s19, 1
          %s288 = smul.addr %s287, 2
          %s289 = smul.addr %s288, 4
          %s290 = scalar_lea.vmem %s2, %s289
        $region85: #{intrinsic_encoder_forward.7} parent=80 // pred_fallthru
          _
      $region81: #{intrinsic_encoder_forward.7} parent=5 // pred_fallthru
        _
    $region6: #{intrinsic_encoder_forward.7} parent=1 // loop_footer
      %s12 = sadd.s32 1, %s8
    $region7: #{intrinsic_encoder_forward.7} parent=1 // loop_footer_branch
      %7 = sbr.rel target = $region3
    $region8: #{intrinsic_encoder_forward.7} parent=1 // loop_exit
      _

// kernel: intrinsic_encoder_forward.8
$region0: #{intrinsic_encoder_forward.8}
  #allocation0 [shape = 'u32[]', space=smem, size = 0x4, offset = 0x4, fixed_abs, tag = 'smem constant byte address 0x4 - core index']
  #allocation1 [shape = 'u32[72,128]{1,0:T(1,128)}', space=vmem, size = 0x9000, scoped, tag = 'internal scratch']
  #allocation2 [shape = 'f32[2,8,128]{2,1,0:T(8,128)}', space=vmem, size = 0x2000, scoped, tag = 'scratch operand']
  %s0 = inlined_call_operand.vmem [shape: bf16[2,392,256], index: 0, kind: input, shape index: {}]
  %s1 = inlined_call_operand.vmem [shape: bf16[8,392], index: 1, kind: input, shape index: {}]
  %s2 = inlined_call_operand.vmem [shape: bf16[2,8,256], index: 2, kind: output, shape index: {}]
  %s3 = sld [smem:[#allocation0]]
  $region86: #{intrinsic_encoder_forward.8} parent=0
    _
  %s5 = ssub.s32 1, %s3
  %s6 = scalar_select 0, %s5, %s3
  $region1: #{intrinsic_encoder_forward.8} parent=0
    #allocation3 [shape = 'u8[200704]{0}', space=vmem, size = 0x31000, scoped, tag = 'input window, operand 0']
    loop: start=0, step=1, limit=6
    $region2: #{intrinsic_encoder_forward.8} parent=1 // loop_pre_header
      _
    $region3: #{intrinsic_encoder_forward.8} parent=1 // loop_header
      %s8 = sphi 0, %s12
      %p9 = scmp.ge.s32.totalorder %s8, 6
      %s15 = sphi 0, %s27
      %s16 = sphi 0, %s23
      %s17 = sphi 0, %s15
      %s18 = sphi 0, %s16
      %s19 = sphi 0, %s17
      %s20 = sphi 0, %s18
      %s32 = sphi 0, %s34
      %s35 = sphi 0, %s32
      %s36 = sphi 0, %s35
      %s52 = sphi 0, %s36
      %s56 = sphi 0, %s56
      %s58 = sphi 0, %s56
      %s59 = sphi 0, %s58
      %s73 = sphi 0, %s59
      %s79 = sphi 0, %s81
      %s82 = sphi 0, %s79
      %s83 = sphi 0, %s82
      %s99 = sphi 0, %s83
    $region4: #{intrinsic_encoder_forward.8} parent=1 // loop_header_branch
      %11 = sbr.rel (%p9) target = $region8
    $region5: #{intrinsic_encoder_forward.8} parent=1 // loop_body
      %s13 = ssub.s32 %s8, 1
      %s14 = ssub.s32 %s8, 2
      %s21 = sadd.s32 1, %s16
      %p22 = scmp.ge.s32.totalorder %s21, 2
      %s23 = scalar_select %p22, 0, %s21
      %s24 = sadd.s32 1, %s15
      %s25 = scalar_select %p22, %s24, %s15
      %p26 = scmp.ge.s32.totalorder %s25, 2
      %s27 = scalar_select %p26, 0, %s25
      %s28 = ssub.s32 %s15, %s27
      %s29 = ssub.s32 %s16, %s23
      %s30 = sor.u32 %s28, %s29
      %p31 = scmp.eq.s32.totalorder %s30, 0
      %s33 = sadd.s32 %s32, 1
      %s34 = scalar_select %p31, %s32, %s33
      %p37 = pneg %p31
      %p38 = scmp.eq.s32.totalorder %s8, 3
      %p39 = por %p37, %p38
      %p40 = scmp.ne.s32.totalorder %s32, %s35
      %p41 = scmp.eq.s32.totalorder %s8, 0
      %p42 = por %p40, %p41
      %p43 = scmp.ne.s32.totalorder %s32, %s35
      %p44 = scmp.eq.s32.totalorder %s13, 3
      %p45 = por %p43, %p44
      %p46 = scmp.ne.s32.totalorder %s35, %s36
      %p47 = scmp.eq.s32.totalorder %s13, 0
      %p48 = por %p46, %p47
      %p49 = scmp.ne.s32.totalorder %s35, %s36
      %p50 = scmp.eq.s32.totalorder %s14, 3
      %p51 = por %p49, %p50
      %p53 = scmp.ne.s32.totalorder %s36, %s52
      %p54 = scmp.eq.s32.totalorder %s14, 0
      %p55 = por %p53, %p54
      %s57 = sadd.s32 %s56, 1
      %p60 = scmp.eq.s32.totalorder %s8, 3
      %p61 = scmp.ne.s32.totalorder %s56, %s58
      %p62 = scmp.eq.s32.totalorder %s8, 0
      %p63 = por %p61, %p62
      %p64 = scmp.ne.s32.totalorder %s56, %s58
      %p65 = scmp.eq.s32.totalorder %s13, 3
      %p66 = por %p64, %p65
      %p67 = scmp.ne.s32.totalorder %s58, %s59
      %p68 = scmp.eq.s32.totalorder %s13, 0
      %p69 = por %p67, %p68
      %p70 = scmp.ne.s32.totalorder %s58, %s59
      %p71 = scmp.eq.s32.totalorder %s14, 3
      %p72 = por %p70, %p71
      %p74 = scmp.ne.s32.totalorder %s59, %s73
      %p75 = scmp.eq.s32.totalorder %s14, 0
      %p76 = por %p74, %p75
      %s77 = ssub.s32 %s15, %s27
      %p78 = scmp.eq.s32.totalorder %s77, 0
      %s80 = sadd.s32 %s79, 1
      %s81 = scalar_select %p78, %s79, %s80
      %p84 = pneg %p78
      %p85 = scmp.eq.s32.totalorder %s8, 3
      %p86 = por %p84, %p85
      %p87 = scmp.ne.s32.totalorder %s79, %s82
      %p88 = scmp.eq.s32.totalorder %s8, 0
      %p89 = por %p87, %p88
      %p90 = scmp.ne.s32.totalorder %s79, %s82
      %p91 = scmp.eq.s32.totalorder %s13, 3
      %p92 = por %p90, %p91
      %p93 = scmp.ne.s32.totalorder %s82, %s83
      %p94 = scmp.eq.s32.totalorder %s13, 0
      %p95 = por %p93, %p94
      %p96 = scmp.ne.s32.totalorder %s82, %s83
      %p97 = scmp.eq.s32.totalorder %s14, 3
      %p98 = por %p96, %p97
      %p100 = scmp.ne.s32.totalorder %s83, %s99
      %p101 = scmp.eq.s32.totalorder %s14, 0
      %p102 = por %p100, %p101
      %p103 = scmp.le.s32.totalorder 1, %s8
      %p104 = scmp.lt.s32.totalorder %s8, 5
      %p105 = pnand %p103, %p104
      %p106 = pneg %p105
      // Predicated region
      $region9: #{intrinsic_encoder_forward.8} parent=5 // pred_check
        _
      $region10: #{intrinsic_encoder_forward.8} parent=5 // pred_check_branch
        %108 = sbr.rel (%p105) target = $region12
      $region11: #{intrinsic_encoder_forward.8} parent=5 // pred_region
        %s109 = ssub.s32 %s8, 1
        // Predicated region
        $region13: #{intrinsic_encoder_forward.8} parent=11 // pred_check
          %p110 = pneg %p69
        $region14: #{intrinsic_encoder_forward.8} parent=11 // pred_check_branch
          %112 = sbr.rel (%p110) target = $region16
        $region15: #{intrinsic_encoder_forward.8} parent=11 // pred_region
          _
        $region16: #{intrinsic_encoder_forward.8} parent=11 // pred_fallthru
          _
      $region12: #{intrinsic_encoder_forward.8} parent=5 // pred_fallthru
        _
      %p113 = scmp.lt.s32.totalorder %s8, 4
      // Predicated region
      $region17: #{intrinsic_encoder_forward.8} parent=5 // pred_check
        %p114 = pneg %p113
      $region18: #{intrinsic_encoder_forward.8} parent=5 // pred_check_branch
        %116 = sbr.rel (%p114) target = $region20
      $region19: #{intrinsic_encoder_forward.8} parent=5 // pred_region
        // Predicated region
        $region21: #{intrinsic_encoder_forward.8} parent=19 // pred_check
          %p117 = pneg %p42
        $region22: #{intrinsic_encoder_forward.8} parent=19 // pred_check_branch
          %119 = sbr.rel (%p117) target = $region24
        $region23: #{intrinsic_encoder_forward.8} parent=19 // pred_region
          %s120 = sand.u32 %s32, 1
          %s121 = sand.u32 %s32, 1
          %s122 = smul.addr %s121, 196
          %s123 = scalar_lea.vmem [#allocation3], %s122
          %s124 = smul.addr %s15, 98
          %s125 = sadd.s32 %s16, %s124
          %s126 = smul.addr %s125, 4
          %s127 = scalar_lea.vmem %s0, %s126
          // Predicated region
          $region25: #{intrinsic_encoder_forward.8} parent=23 // pred_check
            _
          $region26: #{intrinsic_encoder_forward.8} parent=23 // pred_check_branch
            %129 = sbr.rel (0) target = $region28
          $region27: #{intrinsic_encoder_forward.8} parent=23 // pred_region
            // Predicated region
            $region29: #{intrinsic_encoder_forward.8} parent=27 // pred_check
              _
            $region30: #{intrinsic_encoder_forward.8} parent=27 // pred_check_branch
              %131 = sbr.rel target = $region32
            $region31: #{intrinsic_encoder_forward.8} parent=27 // pred_region
              // Predicated region
              $region44: #{intrinsic_encoder_forward.8} parent=31 // pred_check
                _
              $region45: #{intrinsic_encoder_forward.8} parent=31 // pred_check_branch
                %243 = sbr.rel (0) target = $region47
              $region46: #{intrinsic_encoder_forward.8} parent=31 // pred_region
                loop: start=0, step=1, limit=1
                $region48: #{intrinsic_encoder_forward.8} parent=46 // loop_pre_header
                  _
                $region49: #{intrinsic_encoder_forward.8} parent=46 // loop_header
                  %s245 = sphi 0, %s249
                  %p246 = scmp.ge.s32.totalorder %s245, 1
                  %s250 = sphi %s127, %s127
                  %s251 = sphi %s123, %s123
                $region50: #{intrinsic_encoder_forward.8} parent=46 // loop_header_branch
                  %248 = sbr.rel (%p246) target = $region54
                $region51: #{intrinsic_encoder_forward.8} parent=46 // loop_body
                  _
                $region52: #{intrinsic_encoder_forward.8} parent=46 // loop_footer
                  %s249 = sadd.s32 1, %s245
                $region53: #{intrinsic_encoder_forward.8} parent=46 // loop_footer_branch
                  %244 = sbr.rel target = $region49
                $region54: #{intrinsic_encoder_forward.8} parent=46 // loop_exit
                  _
                %s253 = ssub.s32 16, 1
                loop: start=0, step=1, limit=1
                $region55: #{intrinsic_encoder_forward.8} parent=46 // loop_pre_header
                  _
                $region56: #{intrinsic_encoder_forward.8} parent=46 // loop_header
                  %s255 = sphi 0, %s259
                  %p256 = scmp.ge.s32.totalorder %s255, 1
                  %s260 = sphi %s127, %s127
                  %s261 = sphi %s123, %s123
                $region57: #{intrinsic_encoder_forward.8} parent=46 // loop_header_branch
                  %258 = sbr.rel (%p256) target = $region61
                $region58: #{intrinsic_encoder_forward.8} parent=46 // loop_body
                  %v262 = vld [vmem:[%s260] sm:%s253]
                  %263 = vst [vmem:[%s261] sm:%s253] %v262
                  %v264 = vld [vmem:[%s260 + $0x8] sm:%s253]
                  %265 = vst [vmem:[%s261 + $0x4] sm:%s253] %v264
                  %v266 = vld [vmem:[%s260 + $0x10] sm:%s253]
                  %267 = vst [vmem:[%s261 + $0x8] sm:%s253] %v266
                  %v268 = vld [vmem:[%s260 + $0x18] sm:%s253]
                  %269 = vst [vmem:[%s261 + $0xc] sm:%s253] %v268
                  %v270 = vld [vmem:[%s260 + $0x20] sm:%s253]
                  %271 = vst [vmem:[%s261 + $0x10] sm:%s253] %v270
                  %v272 = vld [vmem:[%s260 + $0x28] sm:%s253]
                  %273 = vst [vmem:[%s261 + $0x14] sm:%s253] %v272
                  %v274 = vld [vmem:[%s260 + $0x30] sm:%s253]
                  %275 = vst [vmem:[%s261 + $0x18] sm:%s253] %v274
                  %v276 = vld [vmem:[%s260 + $0x38] sm:%s253]
                  %277 = vst [vmem:[%s261 + $0x1c] sm:%s253] %v276
                  %v278 = vld [vmem:[%s260 + $0x40] sm:%s253]
                  %279 = vst [vmem:[%s261 + $0x20] sm:%s253] %v278
                  %v280 = vld [vmem:[%s260 + $0x48] sm:%s253]
                  %281 = vst [vmem:[%s261 + $0x24] sm:%s253] %v280
                  %v282 = vld [vmem:[%s260 + $0x50] sm:%s253]
                  %283 = vst [vmem:[%s261 + $0x28] sm:%s253] %v282
                  %v284 = vld [vmem:[%s260 + $0x58] sm:%s253]
                  %285 = vst [vmem:[%s261 + $0x2c] sm:%s253] %v284
                  %v286 = vld [vmem:[%s260 + $0x60] sm:%s253]
                  %287 = vst [vmem:[%s261 + $0x30] sm:%s253] %v286
                  %v288 = vld [vmem:[%s260 + $0x68] sm:%s253]
                  %289 = vst [vmem:[%s261 + $0x34] sm:%s253] %v288
                  %v290 = vld [vmem:[%s260 + $0x70] sm:%s253]
                  %291 = vst [vmem:[%s261 + $0x38] sm:%s253] %v290
                  %v292 = vld [vmem:[%s260 + $0x78] sm:%s253]
                  %293 = vst [vmem:[%s261 + $0x3c] sm:%s253] %v292
                  %v294 = vld [vmem:[%s260 + $0x80] sm:%s253]
                  %295 = vst [vmem:[%s261 + $0x40] sm:%s253] %v294
                  %v296 = vld [vmem:[%s260 + $0x88] sm:%s253]
                  %297 = vst [vmem:[%s261 + $0x44] sm:%s253] %v296
                  %v298 = vld [vmem:[%s260 + $0x90] sm:%s253]
                  %299 = vst [vmem:[%s261 + $0x48] sm:%s253] %v298
                  %v300 = vld [vmem:[%s260 + $0x98] sm:%s253]
                  %301 = vst [vmem:[%s261 + $0x4c] sm:%s253] %v300
                  %v302 = vld [vmem:[%s260 + $0xa0] sm:%s253]
                  %303 = vst [vmem:[%s261 + $0x50] sm:%s253] %v302
                  %v304 = vld [vmem:[%s260 + $0xa8] sm:%s253]
                  %305 = vst [vmem:[%s261 + $0x54] sm:%s253] %v304
                  %v306 = vld [vmem:[%s260 + $0xb0] sm:%s253]
                  %307 = vst [vmem:[%s261 + $0x58] sm:%s253] %v306
                  %v308 = vld [vmem:[%s260 + $0xb8] sm:%s253]
                  %309 = vst [vmem:[%s261 + $0x5c] sm:%s253] %v308
                  %v310 = vld [vmem:[%s260 + $0xc0] sm:%s253]
                  %311 = vst [vmem:[%s261 + $0x60] sm:%s253] %v310
                  %v312 = vld [vmem:[%s260 + $0xc8] sm:%s253]
                  %313 = vst [vmem:[%s261 + $0x64] sm:%s253] %v312
                  %v314 = vld [vmem:[%s260 + $0xd0] sm:%s253]
                  %315 = vst [vmem:[%s261 + $0x68] sm:%s253] %v314
                  %v316 = vld [vmem:[%s260 + $0xd8] sm:%s253]
                  %317 = vst [vmem:[%s261 + $0x6c] sm:%s253] %v316
                  %v318 = vld [vmem:[%s260 + $0xe0] sm:%s253]
                  %319 = vst [vmem:[%s261 + $0x70] sm:%s253] %v318
                  %v320 = vld [vmem:[%s260 + $0xe8] sm:%s253]
                  %321 = vst [vmem:[%s261 + $0x74] sm:%s253] %v320
                  %v322 = vld [vmem:[%s260 + $0xf0] sm:%s253]
                  %323 = vst [vmem:[%s261 + $0x78] sm:%s253] %v322
                  %v324 = vld [vmem:[%s260 + $0xf8] sm:%s253]
                  %325 = vst [vmem:[%s261 + $0x7c] sm:%s253] %v324
                  %v326 = vld [vmem:[%s260 + $0x100] sm:%s253]
                  %327 = vst [vmem:[%s261 + $0x80] sm:%s253] %v326
                  %v328 = vld [vmem:[%s260 + $0x108] sm:%s253]
                  %329 = vst [vmem:[%s261 + $0x84] sm:%s253] %v328
                  %v330 = vld [vmem:[%s260 + $0x110] sm:%s253]
                  %331 = vst [vmem:[%s261 + $0x88] sm:%s253] %v330
                  %v332 = vld [vmem:[%s260 + $0x118] sm:%s253]
                  %333 = vst [vmem:[%s261 + $0x8c] sm:%s253] %v332
                  %v334 = vld [vmem:[%s260 + $0x120] sm:%s253]
                  %335 = vst [vmem:[%s261 + $0x90] sm:%s253] %v334
                  %v336 = vld [vmem:[%s260 + $0x128] sm:%s253]
                  %337 = vst [vmem:[%s261 + $0x94] sm:%s253] %v336
                  %v338 = vld [vmem:[%s260 + $0x130] sm:%s253]
                  %339 = vst [vmem:[%s261 + $0x98] sm:%s253] %v338
                  %v340 = vld [vmem:[%s260 + $0x138] sm:%s253]
                  %341 = vst [vmem:[%s261 + $0x9c] sm:%s253] %v340
                  %v342 = vld [vmem:[%s260 + $0x140] sm:%s253]
                  %343 = vst [vmem:[%s261 + $0xa0] sm:%s253] %v342
                  %v344 = vld [vmem:[%s260 + $0x148] sm:%s253]
                  %345 = vst [vmem:[%s261 + $0xa4] sm:%s253] %v344
                  %v346 = vld [vmem:[%s260 + $0x150] sm:%s253]
                  %347 = vst [vmem:[%s261 + $0xa8] sm:%s253] %v346
                  %v348 = vld [vmem:[%s260 + $0x158] sm:%s253]
                  %349 = vst [vmem:[%s261 + $0xac] sm:%s253] %v348
                  %v350 = vld [vmem:[%s260 + $0x160] sm:%s253]
                  %351 = vst [vmem:[%s261 + $0xb0] sm:%s253] %v350
                  %v352 = vld [vmem:[%s260 + $0x168] sm:%s253]
                  %353 = vst [vmem:[%s261 + $0xb4] sm:%s253] %v352
                  %v354 = vld [vmem:[%s260 + $0x170] sm:%s253]
                  %355 = vst [vmem:[%s261 + $0xb8] sm:%s253] %v354
                  %v356 = vld [vmem:[%s260 + $0x178] sm:%s253]
                  %357 = vst [vmem:[%s261 + $0xbc] sm:%s253] %v356
                  %v358 = vld [vmem:[%s260 + $0x180] sm:%s253]
                  %359 = vst [vmem:[%s261 + $0xc0] sm:%s253] %v358
                $region59: #{intrinsic_encoder_forward.8} parent=46 // loop_footer
                  %s259 = sadd.s32 1, %s255
                $region60: #{intrinsic_encoder_forward.8} parent=46 // loop_footer_branch
                  %254 = sbr.rel target = $region56
                $region61: #{intrinsic_encoder_forward.8} parent=46 // loop_exit
                  _
              $region47: #{intrinsic_encoder_forward.8} parent=31 // pred_fallthru
                _
            $region32: #{intrinsic_encoder_forward.8} parent=27 // pred_fallthru
              _
            // Predicated region
            $region33: #{intrinsic_encoder_forward.8} parent=27 // pred_check
              _
            $region34: #{intrinsic_encoder_forward.8} parent=27 // pred_check_branch
              %133 = sbr.rel (0) target = $region36
            $region35: #{intrinsic_encoder_forward.8} parent=27 // pred_region
              %s135 = ssub.s32 16, 1
              loop: start=0, step=1, limit=1
              $region37: #{intrinsic_encoder_forward.8} parent=35 // loop_pre_header
                _
              $region38: #{intrinsic_encoder_forward.8} parent=35 // loop_header
                %s137 = sphi 0, %s141
                %p138 = scmp.ge.s32.totalorder %s137, 1
                %s142 = sphi %s127, %s127
                %s143 = sphi %s123, %s123
              $region39: #{intrinsic_encoder_forward.8} parent=35 // loop_header_branch
                %140 = sbr.rel (%p138) target = $region43
              $region40: #{intrinsic_encoder_forward.8} parent=35 // loop_body
                %v144 = vld [vmem:[%s142] sm:%s135]
                %145 = vst [vmem:[%s143] sm:%s135] %v144
                %v146 = vld [vmem:[%s142 + $0x8] sm:%s135]
                %147 = vst [vmem:[%s143 + $0x4] sm:%s135] %v146
                %v148 = vld [vmem:[%s142 + $0x10] sm:%s135]
                %149 = vst [vmem:[%s143 + $0x8] sm:%s135] %v148
                %v150 = vld [vmem:[%s142 + $0x18] sm:%s135]
                %151 = vst [vmem:[%s143 + $0xc] sm:%s135] %v150
                %v152 = vld [vmem:[%s142 + $0x20] sm:%s135]
                %153 = vst [vmem:[%s143 + $0x10] sm:%s135] %v152
                %v154 = vld [vmem:[%s142 + $0x28] sm:%s135]
                %155 = vst [vmem:[%s143 + $0x14] sm:%s135] %v154
                %v156 = vld [vmem:[%s142 + $0x30] sm:%s135]
                %157 = vst [vmem:[%s143 + $0x18] sm:%s135] %v156
                %v158 = vld [vmem:[%s142 + $0x38] sm:%s135]
                %159 = vst [vmem:[%s143 + $0x1c] sm:%s135] %v158
                %v160 = vld [vmem:[%s142 + $0x40] sm:%s135]
                %161 = vst [vmem:[%s143 + $0x20] sm:%s135] %v160
                %v162 = vld [vmem:[%s142 + $0x48] sm:%s135]
                %163 = vst [vmem:[%s143 + $0x24] sm:%s135] %v162
                %v164 = vld [vmem:[%s142 + $0x50] sm:%s135]
                %165 = vst [vmem:[%s143 + $0x28] sm:%s135] %v164
                %v166 = vld [vmem:[%s142 + $0x58] sm:%s135]
                %167 = vst [vmem:[%s143 + $0x2c] sm:%s135] %v166
                %v168 = vld [vmem:[%s142 + $0x60] sm:%s135]
                %169 = vst [vmem:[%s143 + $0x30] sm:%s135] %v168
                %v170 = vld [vmem:[%s142 + $0x68] sm:%s135]
                %171 = vst [vmem:[%s143 + $0x34] sm:%s135] %v170
                %v172 = vld [vmem:[%s142 + $0x70] sm:%s135]
                %173 = vst [vmem:[%s143 + $0x38] sm:%s135] %v172
                %v174 = vld [vmem:[%s142 + $0x78] sm:%s135]
                %175 = vst [vmem:[%s143 + $0x3c] sm:%s135] %v174
                %v176 = vld [vmem:[%s142 + $0x80] sm:%s135]
                %177 = vst [vmem:[%s143 + $0x40] sm:%s135] %v176
                %v178 = vld [vmem:[%s142 + $0x88] sm:%s135]
                %179 = vst [vmem:[%s143 + $0x44] sm:%s135] %v178
                %v180 = vld [vmem:[%s142 + $0x90] sm:%s135]
                %181 = vst [vmem:[%s143 + $0x48] sm:%s135] %v180
                %v182 = vld [vmem:[%s142 + $0x98] sm:%s135]
                %183 = vst [vmem:[%s143 + $0x4c] sm:%s135] %v182
                %v184 = vld [vmem:[%s142 + $0xa0] sm:%s135]
                %185 = vst [vmem:[%s143 + $0x50] sm:%s135] %v184
                %v186 = vld [vmem:[%s142 + $0xa8] sm:%s135]
                %187 = vst [vmem:[%s143 + $0x54] sm:%s135] %v186
                %v188 = vld [vmem:[%s142 + $0xb0] sm:%s135]
                %189 = vst [vmem:[%s143 + $0x58] sm:%s135] %v188
                %v190 = vld [vmem:[%s142 + $0xb8] sm:%s135]
                %191 = vst [vmem:[%s143 + $0x5c] sm:%s135] %v190
                %v192 = vld [vmem:[%s142 + $0xc0] sm:%s135]
                %193 = vst [vmem:[%s143 + $0x60] sm:%s135] %v192
                %v194 = vld [vmem:[%s142 + $0xc8] sm:%s135]
                %195 = vst [vmem:[%s143 + $0x64] sm:%s135] %v194
                %v196 = vld [vmem:[%s142 + $0xd0] sm:%s135]
                %197 = vst [vmem:[%s143 + $0x68] sm:%s135] %v196
                %v198 = vld [vmem:[%s142 + $0xd8] sm:%s135]
                %199 = vst [vmem:[%s143 + $0x6c] sm:%s135] %v198
                %v200 = vld [vmem:[%s142 + $0xe0] sm:%s135]
                %201 = vst [vmem:[%s143 + $0x70] sm:%s135] %v200
                %v202 = vld [vmem:[%s142 + $0xe8] sm:%s135]
                %203 = vst [vmem:[%s143 + $0x74] sm:%s135] %v202
                %v204 = vld [vmem:[%s142 + $0xf0] sm:%s135]
                %205 = vst [vmem:[%s143 + $0x78] sm:%s135] %v204
                %v206 = vld [vmem:[%s142 + $0xf8] sm:%s135]
                %207 = vst [vmem:[%s143 + $0x7c] sm:%s135] %v206
                %v208 = vld [vmem:[%s142 + $0x100] sm:%s135]
                %209 = vst [vmem:[%s143 + $0x80] sm:%s135] %v208
                %v210 = vld [vmem:[%s142 + $0x108] sm:%s135]
                %211 = vst [vmem:[%s143 + $0x84] sm:%s135] %v210
                %v212 = vld [vmem:[%s142 + $0x110] sm:%s135]
                %213 = vst [vmem:[%s143 + $0x88] sm:%s135] %v212
                %v214 = vld [vmem:[%s142 + $0x118] sm:%s135]
                %215 = vst [vmem:[%s143 + $0x8c] sm:%s135] %v214
                %v216 = vld [vmem:[%s142 + $0x120] sm:%s135]
                %217 = vst [vmem:[%s143 + $0x90] sm:%s135] %v216
                %v218 = vld [vmem:[%s142 + $0x128] sm:%s135]
                %219 = vst [vmem:[%s143 + $0x94] sm:%s135] %v218
                %v220 = vld [vmem:[%s142 + $0x130] sm:%s135]
                %221 = vst [vmem:[%s143 + $0x98] sm:%s135] %v220
                %v222 = vld [vmem:[%s142 + $0x138] sm:%s135]
                %223 = vst [vmem:[%s143 + $0x9c] sm:%s135] %v222
                %v224 = vld [vmem:[%s142 + $0x140] sm:%s135]
                %225 = vst [vmem:[%s143 + $0xa0] sm:%s135] %v224
                %v226 = vld [vmem:[%s142 + $0x148] sm:%s135]
                %227 = vst [vmem:[%s143 + $0xa4] sm:%s135] %v226
                %v228 = vld [vmem:[%s142 + $0x150] sm:%s135]
                %229 = vst [vmem:[%s143 + $0xa8] sm:%s135] %v228
                %v230 = vld [vmem:[%s142 + $0x158] sm:%s135]
                %231 = vst [vmem:[%s143 + $0xac] sm:%s135] %v230
                %v232 = vld [vmem:[%s142 + $0x160] sm:%s135]
                %233 = vst [vmem:[%s143 + $0xb0] sm:%s135] %v232
                %v234 = vld [vmem:[%s142 + $0x168] sm:%s135]
                %235 = vst [vmem:[%s143 + $0xb4] sm:%s135] %v234
                %v236 = vld [vmem:[%s142 + $0x170] sm:%s135]
                %237 = vst [vmem:[%s143 + $0xb8] sm:%s135] %v236
                %v238 = vld [vmem:[%s142 + $0x178] sm:%s135]
                %239 = vst [vmem:[%s143 + $0xbc] sm:%s135] %v238
                %v240 = vld [vmem:[%s142 + $0x180] sm:%s135]
                %241 = vst [vmem:[%s143 + $0xc0] sm:%s135] %v240
              $region41: #{intrinsic_encoder_forward.8} parent=35 // loop_footer
                %s141 = sadd.s32 1, %s137
              $region42: #{intrinsic_encoder_forward.8} parent=35 // loop_footer_branch
                %136 = sbr.rel target = $region38
              $region43: #{intrinsic_encoder_forward.8} parent=35 // loop_exit
                _
            $region36: #{intrinsic_encoder_forward.8} parent=27 // pred_fallthru
              _
          $region28: #{intrinsic_encoder_forward.8} parent=23 // pred_fallthru
            _
          %360 = vnop
        $region24: #{intrinsic_encoder_forward.8} parent=19 // pred_fallthru
          _
      $region20: #{intrinsic_encoder_forward.8} parent=5 // pred_fallthru
        _
      %p361 = scmp.le.s32.totalorder 1, %s8
      %p362 = scmp.lt.s32.totalorder %s8, 5
      %p363 = pnand %p361, %p362
      %p364 = pneg %p363
      // Predicated region
      $region62: #{intrinsic_encoder_forward.8} parent=5 // pred_check
        _
      $region63: #{intrinsic_encoder_forward.8} parent=5 // pred_check_branch
        %366 = sbr.rel (%p363) target = $region65
      $region64: #{intrinsic_encoder_forward.8} parent=5 // pred_region
        %s367 = ssub.s32 %s8, 1
        %s368 = sand.u32 %s35, 1
        %s369 = sand.u32 %s35, 1
        %s370 = smul.addr %s369, 196
        %s371 = scalar_lea.vmem [#allocation3], %s370
        // Predicated region
        $region66: #{intrinsic_encoder_forward.8} parent=64 // pred_check
          %p372 = pneg %p48
        $region67: #{intrinsic_encoder_forward.8} parent=64 // pred_check_branch
          %374 = sbr.rel (%p372) target = $region69
        $region68: #{intrinsic_encoder_forward.8} parent=64 // pred_region
          _
        $region69: #{intrinsic_encoder_forward.8} parent=64 // pred_fallthru
          _
        %s375 = sand.u32 %s35, 1
        %s376 = sand.u32 %s35, 1
        %s377 = smul.addr %s376, 196
        %s378 = scalar_lea.vmem [#allocation3], %s377
        %p379 = pneg %p48
        %p380 = pneg %p45
        %p381 = pneg %p69
        %p382 = pneg %p66
        %p383 = pneg %p95
        %p384 = pneg %p92
        %p385 = scmp.lt.s32.totalorder %s17, 1
        %s386 = scalar_select %p385, %s17, 1
        %s387 = smul.addr %s386, 2
        %s388 = smul.addr %s387, 4
        %s389 = scalar_lea.vmem %s2, %s388
        %p390 = scmp.lt.s32.totalorder %s17, 1
        %s391 = scalar_select %p390, %s17, 1
        %s392 = smul.addr %s391, 2
        %s393 = smul.addr %s392, 4
        %s394 = scalar_lea.vmem %s2, %s393
        %v396 = vld [vmem:[%s1] sm:$0xff]
        %v397 = vld [vmem:[%s1 + $0x8] sm:$0xff]
        %v398 = vld [vmem:[%s371] sm:$0xf]
        %v399 = vld [vmem:[%s371 + $0x4] sm:$0xf]
        %v400 = vld [vmem:[%s371 + $0x8] sm:$0xf]
        %v401 = vld [vmem:[%s371 + $0xc] sm:$0xf]
        %v402 = vld [vmem:[%s371 + $0x10] sm:$0xf]
        %v403 = vld [vmem:[%s371 + $0x14] sm:$0xf]
        %v404 = vld [vmem:[%s371 + $0x18] sm:$0xf]
        %v405 = vld [vmem:[%s371 + $0x1c] sm:$0xf]
        %v406 = vld [vmem:[%s371 + $0x20] sm:$0xf]
        %v407 = vld [vmem:[%s371 + $0x24] sm:$0xf]
        %v408 = vld [vmem:[%s371 + $0x28] sm:$0xf]
        %v409 = vld [vmem:[%s371 + $0x2c] sm:$0xf]
        %v410 = vld [vmem:[%s371 + $0x30] sm:$0xf]
        %v411 = vld [vmem:[%s371 + $0x34] sm:$0xf]
        %v412 = vld [vmem:[%s371 + $0x38] sm:$0xf]
        %v413 = vld [vmem:[%s371 + $0x3c] sm:$0xf]
        %v414 = vld [vmem:[%s371 + $0x40] sm:$0xf]
        %v415 = vld [vmem:[%s371 + $0x44] sm:$0xf]
        %v416 = vld [vmem:[%s371 + $0x48] sm:$0xf]
        %v417 = vld [vmem:[%s371 + $0x4c] sm:$0xf]
        %v418 = vld [vmem:[%s371 + $0x50] sm:$0xf]
        %v419 = vld [vmem:[%s371 + $0x54] sm:$0xf]
        %v420 = vld [vmem:[%s371 + $0x58] sm:$0xf]
        %v421 = vld [vmem:[%s371 + $0x5c] sm:$0xf]
        %v422 = vld [vmem:[%s371 + $0x60] sm:$0xf]
        %v423 = vld [vmem:[%s371 + $0x64] sm:$0xf]
        %v424 = vld [vmem:[%s371 + $0x68] sm:$0xf]
        %v425 = vld [vmem:[%s371 + $0x6c] sm:$0xf]
        %v426 = vld [vmem:[%s371 + $0x70] sm:$0xf]
        %v427 = vld [vmem:[%s371 + $0x74] sm:$0xf]
        %v428 = vld [vmem:[%s371 + $0x78] sm:$0xf]
        %v429 = vld [vmem:[%s371 + $0x7c] sm:$0xf]
        %v430 = vld [vmem:[%s371 + $0x80] sm:$0xf]
        %v431 = vld [vmem:[%s371 + $0x84] sm:$0xf]
        %v432 = vld [vmem:[%s371 + $0x88] sm:$0xf]
        %v433 = vld [vmem:[%s371 + $0x8c] sm:$0xf]
        %v434 = vld [vmem:[%s371 + $0x90] sm:$0xf]
        %v435 = vld [vmem:[%s371 + $0x94] sm:$0xf]
        %v436 = vld [vmem:[%s371 + $0x98] sm:$0xf]
        %v437 = vld [vmem:[%s371 + $0x9c] sm:$0xf]
        %v438 = vld [vmem:[%s371 + $0xa0] sm:$0xf]
        %v439 = vld [vmem:[%s371 + $0xa4] sm:$0xf]
        %v440 = vld [vmem:[%s371 + $0xa8] sm:$0xf]
        %v441 = vld [vmem:[%s371 + $0xac] sm:$0xf]
        %v442 = vld [vmem:[%s371 + $0xb0] sm:$0xf]
        %v443 = vld [vmem:[%s371 + $0xb4] sm:$0xf]
        %v444 = vld [vmem:[%s371 + $0xb8] sm:$0xf]
        %v445 = vld [vmem:[%s371 + $0xbc] sm:$0xf]
        %v446 = vld [vmem:[%s371 + $0xc0] sm:$0xf]
        %v449 = vunpack.c.l.b16 %v396
        %v450 = vunpack.c.h.b16 %v396
        %v451 = vunpack.c.l.b16 %v397
        %v452 = vunpack.c.h.b16 %v397
        %v453 = vpack.c.b16 %v449, %v449
        %v454 = vpack.c.b16 %v450, %v450
        %v455 = vpack.c.b16 %v451, %v451
        %v456 = vpack.c.b16 %v452, %v452
        %v509 = vunpack.c.l.b16 %v398
        %v510 = vunpack.c.l.b16 %v399
        %v511 = vunpack.c.l.b16 %v400
        %v512 = vunpack.c.l.b16 %v401
        %v513 = vunpack.c.l.b16 %v402
        %v514 = vunpack.c.l.b16 %v403
        %v515 = vunpack.c.l.b16 %v404
        %v516 = vunpack.c.l.b16 %v405
        %v517 = vunpack.c.l.b16 %v406
        %v518 = vunpack.c.l.b16 %v407
        %v519 = vunpack.c.l.b16 %v408
        %v520 = vunpack.c.l.b16 %v409
        %v521 = vunpack.c.l.b16 %v410
        %v522 = vunpack.c.l.b16 %v411
        %v523 = vunpack.c.l.b16 %v412
        %v524 = vunpack.c.l.b16 %v413
        %v525 = vunpack.c.l.b16 %v414
        %v526 = vunpack.c.l.b16 %v415
        %v527 = vunpack.c.l.b16 %v416
        %v528 = vunpack.c.l.b16 %v417
        %v529 = vunpack.c.l.b16 %v418
        %v530 = vunpack.c.l.b16 %v419
        %v531 = vunpack.c.l.b16 %v420
        %v532 = vunpack.c.l.b16 %v421
        %v533 = vunpack.c.l.b16 %v422
        %v534 = vunpack.c.l.b16 %v423
        %v535 = vunpack.c.l.b16 %v424
        %v536 = vunpack.c.l.b16 %v425
        %v537 = vunpack.c.l.b16 %v426
        %v538 = vunpack.c.l.b16 %v427
        %v539 = vunpack.c.l.b16 %v428
        %v540 = vunpack.c.l.b16 %v429
        %v541 = vunpack.c.l.b16 %v430
        %v542 = vunpack.c.l.b16 %v431
        %v543 = vunpack.c.l.b16 %v432
        %v544 = vunpack.c.l.b16 %v433
        %v545 = vunpack.c.l.b16 %v434
        %v546 = vunpack.c.l.b16 %v435
        %v547 = vunpack.c.l.b16 %v436
        %v548 = vunpack.c.l.b16 %v437
        %v549 = vunpack.c.l.b16 %v438
        %v550 = vunpack.c.l.b16 %v439
        %v551 = vunpack.c.l.b16 %v440
        %v552 = vunpack.c.l.b16 %v441
        %v553 = vunpack.c.l.b16 %v442
        %v554 = vunpack.c.l.b16 %v443
        %v555 = vunpack.c.l.b16 %v444
        %v556 = vunpack.c.l.b16 %v445
        %v557 = vunpack.c.l.b16 %v446
        %v558 = vpack.c.b16 %v510, %v509
        %v559 = vpack.c.b16 %v512, %v511
        %v560 = vpack.c.b16 %v514, %v513
        %v561 = vpack.c.b16 %v516, %v515
        %v562 = vpack.c.b16 %v518, %v517
        %v563 = vpack.c.b16 %v520, %v519
        %v564 = vpack.c.b16 %v522, %v521
        %v565 = vpack.c.b16 %v524, %v523
        %v566 = vpack.c.b16 %v526, %v525
        %v567 = vpack.c.b16 %v528, %v527
        %v568 = vpack.c.b16 %v530, %v529
        %v569 = vpack.c.b16 %v532, %v531
        %v570 = vpack.c.b16 %v534, %v533
        %v571 = vpack.c.b16 %v536, %v535
        %v572 = vpack.c.b16 %v538, %v537
        %v573 = vpack.c.b16 %v540, %v539
        %v574 = vpack.c.b16 %v542, %v541
        %v575 = vpack.c.b16 %v544, %v543
        %v576 = vpack.c.b16 %v546, %v545
        %v577 = vpack.c.b16 %v548, %v547
        %v578 = vpack.c.b16 %v550, %v549
        %v579 = vpack.c.b16 %v552, %v551
        %v580 = vpack.c.b16 %v554, %v553
        %v581 = vpack.c.b16 %v556, %v555
        %v582 = vpack.c.b16 %v557, %v557
        %vm607 = vcmask 64512
        %v609 = vsel %vm607, %v456, 0
        %vm611 = vcmask 1043456
        %v613 = vsel %vm611, %v582, 0
        %615 = vmatpush.bf16.msra.mxu0 %v565
        %616 = vmatpush.bf16.msra.mxu0 %v564
        %617 = vmatpush.bf16.msra.mxu0 %v563
        %618 = vmatpush.bf16.msra.mxu0 %v562
        %619 = vmatpush.bf16.msra.mxu0 %v561
        %620 = vmatpush.bf16.msra.mxu0 %v560
        %621 = vmatpush.bf16.msra.mxu0 %v559
        %622 = vmatpush.bf16.msra.mxu0 %v558
        %623 = vmatmul.bf16.gmra.mxu0 %v453
        %v624 = vpop.f32.mrf.mxu0
        %v625 = vadd.f32 0.0, %v624
        %v626 = vpop.f32.mrf.mxu0
        %627 = vdwg.mxu0
        %628 = vmatpush.bf16.msra.mxu0 %v573
        %629 = vmatpush.bf16.msra.mxu0 %v572
        %630 = vmatpush.bf16.msra.mxu0 %v571
        %631 = vmatpush.bf16.msra.mxu0 %v570
        %632 = vmatpush.bf16.msra.mxu0 %v569
        %633 = vmatpush.bf16.msra.mxu0 %v568
        %634 = vmatpush.bf16.msra.mxu0 %v567
        %635 = vmatpush.bf16.msra.mxu0 %v566
        %636 = vmatmul.bf16.gmra.mxu0 %v454
        %v637 = vpop.f32.mrf.mxu0
        %v638 = vadd.f32 %v625, %v637
        %v639 = vpop.f32.mrf.mxu0
        %640 = vdwg.mxu0
        %641 = vmatpush.bf16.msra.mxu0 %v581
        %642 = vmatpush.bf16.msra.mxu0 %v580
        %643 = vmatpush.bf16.msra.mxu0 %v579
        %644 = vmatpush.bf16.msra.mxu0 %v578
        %645 = vmatpush.bf16.msra.mxu0 %v577
        %646 = vmatpush.bf16.msra.mxu0 %v576
        %647 = vmatpush.bf16.msra.mxu0 %v575
        %648 = vmatpush.bf16.msra.mxu0 %v574
        %649 = vmatmul.bf16.gmra.mxu0 %v455
        %v650 = vpop.f32.mrf.mxu0
        %v651 = vadd.f32 %v638, %v650
        %v652 = vpop.f32.mrf.mxu0
        %653 = vdwg.mxu0
        %654 = vmatpush.bf16.msra.mxu0 0
        %655 = vmatpush.bf16.msra.mxu0 0
        %656 = vmatpush.bf16.msra.mxu0 0
        %657 = vmatpush.bf16.msra.mxu0 0
        %658 = vmatpush.bf16.msra.mxu0 0
        %659 = vmatpush.bf16.msra.mxu0 0
        %660 = vmatpush.bf16.msra.mxu0 0
        %661 = vmatpush.bf16.msra.mxu0 %v613
        %662 = vmatmul.bf16.gmra.mxu0 %v609
        %v663 = vpop.f32.mrf.mxu0
        %v664 = vadd.f32 %v651, %v663
        %v665 = vpop.f32.mrf.mxu0
        %666 = vdwg.mxu0
        %s667 = smul.u32 %s18, 8
        %s668 = scalar_lea.vmem [#allocation2], %s667
        %669 = vst [vmem:[%s668] sm:$0xff] %v664
        %p670 = scmp.eq.s32.totalorder %s18, 1
        // Predicated region
        $region70: #{intrinsic_encoder_forward.8} parent=64 // pred_check
          %p671 = pneg %p670
        $region71: #{intrinsic_encoder_forward.8} parent=64 // pred_check_branch
          %673 = sbr.rel (%p671) target = $region73
        $region72: #{intrinsic_encoder_forward.8} parent=64 // pred_region
          %v674 = vld [vmem:[#allocation2] sm:$0xff]
          %675 = vadd.xlane.f32.xlu0 %v674
          %v676 = vpop.xlane.xlu0 %675
          %v677 = vadd.f32 %v676, 0.0
          %s678 = scalar_lea.vmem [#allocation2], 8
          %v679 = vld [vmem:[%s678] sm:$0xff]
          %680 = vadd.xlane.f32.xlu0 %v679
          %v681 = vpop.xlane.xlu0 %680
          %v682 = vadd.f32 %v677, %v681
          %v683 = vmul.f32 %v682, 0.00390625
          %v684 = vsub.f32 %v674, %v683
          %v685 = vmul.f32 %v684, %v684
          %686 = vadd.xlane.f32.xlu0 %v685
          %v687 = vpop.xlane.xlu0 %686
          %v688 = vadd.f32 %v687, 0.0
          %v689 = vsub.f32 %v679, %v683
          %v690 = vmul.f32 %v689, %v689
          %691 = vadd.xlane.f32.xlu0 %v690
          %v692 = vpop.xlane.xlu0 %691
          %v693 = vadd.f32 %v688, %v692
          %v694 = vmul.f32 %v693, 0.00390625
          %v695 = vadd.f32 %v694, 1e-05
          %v696 = vrsqrt.pop %v695
          %v697 = vmul.f32 %v696, %v695
          %v698 = vmul.f32 %v697, %v696
          %v699 = vmul.f32 0.5, %v698
          %v700 = vsub.f32 1.5, %v699
          %v701 = vmul.f32 %v696, %v700
          %vm702 = vweird.f32 %v695
          %vm703 = vweird.f32 %v696
          %vm704 = vmor %vm702, %vm703
          %v705 = vsel %vm704, %v696, %v701
          %v706 = vmul.f32 %v684, %v705
          %v707 = vmax.f32 %v706, 0.0
          %v708 = vpack.c.bf16 %v707, %v707
          %709 = vst [vmem:[%s394] sm:$0xf] %v708
          %v710 = vld [vmem:[%s678] sm:$0xff]
          %v711 = vsub.f32 %v710, %v683
          %v712 = vmul.f32 %v711, %v705
          %v713 = vmax.f32 %v712, 0.0
          %v714 = vpack.c.bf16 %v713, %v713
          %715 = vst [vmem:[%s394 + $0x4] sm:$0xf] %v714
        $region73: #{intrinsic_encoder_forward.8} parent=64 // pred_fallthru
          _
        %p716 = scmp.lt.s32.totalorder %s17, 1
        %s717 = scalar_select %p716, %s17, 1
        %s718 = smul.addr %s717, 2
        %s719 = smul.addr %s718, 4
        %s720 = scalar_lea.vmem %s2, %s719
        // Predicated region
        $region74: #{intrinsic_encoder_forward.8} parent=64 // pred_check
          %p721 = pneg %p92
        $region75: #{intrinsic_encoder_forward.8} parent=64 // pred_check_branch
          %723 = sbr.rel (%p721) target = $region77
        $region76: #{intrinsic_encoder_forward.8} parent=64 // pred_region
          _
        $region77: #{intrinsic_encoder_forward.8} parent=64 // pred_fallthru
          _
      $region65: #{intrinsic_encoder_forward.8} parent=5 // pred_fallthru
        _
      %p724 = scmp.le.s32.totalorder 2, %s8
      // Predicated region
      $region78: #{intrinsic_encoder_forward.8} parent=5 // pred_check
        %p725 = pneg %p724
      $region79: #{intrinsic_encoder_forward.8} parent=5 // pred_check_branch
        %727 = sbr.rel (%p725) target = $region81
      $region80: #{intrinsic_encoder_forward.8} parent=5 // pred_region
        %s728 = ssub.s32 %s8, 2
        // Predicated region
        $region82: #{intrinsic_encoder_forward.8} parent=80 // pred_check
          %p729 = pneg %p98
        $region83: #{intrinsic_encoder_forward.8} parent=80 // pred_check_branch
          %731 = sbr.rel (%p729) target = $region85
        $region84: #{intrinsic_encoder_forward.8} parent=80 // pred_region
          %p732 = scmp.lt.s32.totalorder %s19, 1
          %s733 = scalar_select %p732, %s19, 1
          %s734 = smul.addr %s733, 2
          %s735 = smul.addr %s734, 4
          %s736 = scalar_lea.vmem %s2, %s735
        $region85: #{intrinsic_encoder_forward.8} parent=80 // pred_fallthru
          _
      $region81: #{intrinsic_encoder_forward.8} parent=5 // pred_fallthru
        _
    $region6: #{intrinsic_encoder_forward.8} parent=1 // loop_footer
      %s12 = sadd.s32 1, %s8
    $region7: #{intrinsic_encoder_forward.8} parent=1 // loop_footer_branch
      %7 = sbr.rel target = $region3
    $region8: #{intrinsic_encoder_forward.8} parent=1 // loop_exit
      _

// kernel: intrinsic_encoder_forward.9
$region0: #{intrinsic_encoder_forward.9}
  #allocation0 [shape = 'u32[]', space=smem, size = 0x4, offset = 0x4, fixed_abs, tag = 'smem constant byte address 0x4 - core index']
  #allocation1 [shape = 'u32[72,128]{1,0:T(1,128)}', space=vmem, size = 0x9000, scoped, tag = 'internal scratch']
  #allocation2 [shape = 'f32[1,16,64]{2,1,0:T(8,128)}', space=vmem, size = 0x2000, scoped, tag = 'scratch operand']
  %s0 = inlined_call_operand.vmem [shape: bf16[2,72,64], index: 0, kind: input, shape index: {}]
  %s1 = inlined_call_operand.vmem [shape: bf16[16,72], index: 1, kind: input, shape index: {}]
  %s2 = inlined_call_operand.vmem [shape: bf16[2,16,64], index: 2, kind: output, shape index: {}]
  %s3 = sld [smem:[#allocation0]]
  $region45: #{intrinsic_encoder_forward.9} parent=0
    _
  %s5 = ssub.s32 1, %s3
  %s6 = scalar_select 0, %s5, %s3
  loop: start=0, step=1, limit=4
  $region2: #{intrinsic_encoder_forward.9} parent=0 // loop_pre_header
    _
  $region3: #{intrinsic_encoder_forward.9} parent=0 // loop_header
    %s8 = sphi 0, %s12
    %p9 = scmp.ge.s32.totalorder %s8, 4
    %s15 = sphi 0, %s27
    %s16 = sphi 0, %s23
    %s17 = sphi 0, %s15
    %s18 = sphi 0, %s16
    %s19 = sphi 0, %s17
    %s20 = sphi 0, %s18
    %s32 = sphi 0, %s34
    %s35 = sphi 0, %s32
    %s36 = sphi 0, %s35
    %s52 = sphi 0, %s36
    %s56 = sphi 0, %s56
    %s58 = sphi 0, %s56
    %s59 = sphi 0, %s58
    %s73 = sphi 0, %s59
    %s79 = sphi 0, %s81
    %s82 = sphi 0, %s79
    %s83 = sphi 0, %s82
    %s99 = sphi 0, %s83
  $region4: #{intrinsic_encoder_forward.9} parent=0 // loop_header_branch
    %11 = sbr.rel (%p9) target = $region8
  $region5: #{intrinsic_encoder_forward.9} parent=0 // loop_body
    %s13 = ssub.s32 %s8, 1
    %s14 = ssub.s32 %s8, 2
    %s21 = sadd.s32 1, %s16
    %p22 = scmp.ge.s32.totalorder %s21, 1
    %s23 = scalar_select %p22, 0, %s21
    %s24 = sadd.s32 1, %s15
    %s25 = scalar_select %p22, %s24, %s15
    %p26 = scmp.ge.s32.totalorder %s25, 2
    %s27 = scalar_select %p26, 0, %s25
    %s28 = ssub.s32 %s15, %s27
    %s29 = ssub.s32 %s16, %s23
    %s30 = sor.u32 %s28, %s29
    %p31 = scmp.eq.s32.totalorder %s30, 0
    %s33 = sadd.s32 %s32, 1
    %s34 = scalar_select %p31, %s32, %s33
    %p37 = pneg %p31
    %p38 = scmp.eq.s32.totalorder %s8, 1
    %p39 = por %p37, %p38
    %p40 = scmp.ne.s32.totalorder %s32, %s35
    %p41 = scmp.eq.s32.totalorder %s8, 0
    %p42 = por %p40, %p41
    %p43 = scmp.ne.s32.totalorder %s32, %s35
    %p44 = scmp.eq.s32.totalorder %s13, 1
    %p45 = por %p43, %p44
    %p46 = scmp.ne.s32.totalorder %s35, %s36
    %p47 = scmp.eq.s32.totalorder %s13, 0
    %p48 = por %p46, %p47
    %p49 = scmp.ne.s32.totalorder %s35, %s36
    %p50 = scmp.eq.s32.totalorder %s14, 1
    %p51 = por %p49, %p50
    %p53 = scmp.ne.s32.totalorder %s36, %s52
    %p54 = scmp.eq.s32.totalorder %s14, 0
    %p55 = por %p53, %p54
    %s57 = sadd.s32 %s56, 1
    %p60 = scmp.eq.s32.totalorder %s8, 1
    %p61 = scmp.ne.s32.totalorder %s56, %s58
    %p62 = scmp.eq.s32.totalorder %s8, 0
    %p63 = por %p61, %p62
    %p64 = scmp.ne.s32.totalorder %s56, %s58
    %p65 = scmp.eq.s32.totalorder %s13, 1
    %p66 = por %p64, %p65
    %p67 = scmp.ne.s32.totalorder %s58, %s59
    %p68 = scmp.eq.s32.totalorder %s13, 0
    %p69 = por %p67, %p68
    %p70 = scmp.ne.s32.totalorder %s58, %s59
    %p71 = scmp.eq.s32.totalorder %s14, 1
    %p72 = por %p70, %p71
    %p74 = scmp.ne.s32.totalorder %s59, %s73
    %p75 = scmp.eq.s32.totalorder %s14, 0
    %p76 = por %p74, %p75
    %s77 = ssub.s32 %s15, %s27
    %p78 = scmp.eq.s32.totalorder %s77, 0
    %s80 = sadd.s32 %s79, 1
    %s81 = scalar_select %p78, %s79, %s80
    %p84 = pneg %p78
    %p85 = scmp.eq.s32.totalorder %s8, 1
    %p86 = por %p84, %p85
    %p87 = scmp.ne.s32.totalorder %s79, %s82
    %p88 = scmp.eq.s32.totalorder %s8, 0
    %p89 = por %p87, %p88
    %p90 = scmp.ne.s32.totalorder %s79, %s82
    %p91 = scmp.eq.s32.totalorder %s13, 1
    %p92 = por %p90, %p91
    %p93 = scmp.ne.s32.totalorder %s82, %s83
    %p94 = scmp.eq.s32.totalorder %s13, 0
    %p95 = por %p93, %p94
    %p96 = scmp.ne.s32.totalorder %s82, %s83
    %p97 = scmp.eq.s32.totalorder %s14, 1
    %p98 = por %p96, %p97
    %p100 = scmp.ne.s32.totalorder %s83, %s99
    %p101 = scmp.eq.s32.totalorder %s14, 0
    %p102 = por %p100, %p101
    %p103 = scmp.le.s32.totalorder 1, %s8
    %p104 = scmp.lt.s32.totalorder %s8, 3
    %p105 = pnand %p103, %p104
    %p106 = pneg %p105
    // Predicated region
    $region9: #{intrinsic_encoder_forward.9} parent=5 // pred_check
      _
    $region10: #{intrinsic_encoder_forward.9} parent=5 // pred_check_branch
      %108 = sbr.rel (%p105) target = $region12
    $region11: #{intrinsic_encoder_forward.9} parent=5 // pred_region
      %s109 = ssub.s32 %s8, 1
      // Predicated region
      $region13: #{intrinsic_encoder_forward.9} parent=11 // pred_check
        %p110 = pneg %p69
      $region14: #{intrinsic_encoder_forward.9} parent=11 // pred_check_branch
        %112 = sbr.rel (%p110) target = $region16
      $region15: #{intrinsic_encoder_forward.9} parent=11 // pred_region
        _
      $region16: #{intrinsic_encoder_forward.9} parent=11 // pred_fallthru
        _
    $region12: #{intrinsic_encoder_forward.9} parent=5 // pred_fallthru
      _
    %p113 = scmp.lt.s32.totalorder %s8, 2
    // Predicated region
    $region17: #{intrinsic_encoder_forward.9} parent=5 // pred_check
      %p114 = pneg %p113
    $region18: #{intrinsic_encoder_forward.9} parent=5 // pred_check_branch
      %116 = sbr.rel (%p114) target = $region20
    $region19: #{intrinsic_encoder_forward.9} parent=5 // pred_region
      // Predicated region
      $region21: #{intrinsic_encoder_forward.9} parent=19 // pred_check
        %p117 = pneg %p42
      $region22: #{intrinsic_encoder_forward.9} parent=19 // pred_check_branch
        %119 = sbr.rel (%p117) target = $region24
      $region23: #{intrinsic_encoder_forward.9} parent=19 // pred_region
        %p120 = scmp.lt.s32.totalorder %s15, 1
        %s121 = scalar_select %p120, %s15, 1
        %p122 = scmp.lt.s32.totalorder %s16, 0
        %s123 = scalar_select %p122, %s16, 0
        %s124 = smul.addr %s121, 9
        %s125 = sadd.s32 %s123, %s124
        %s126 = smul.addr %s125, 4
        %s127 = scalar_lea.vmem %s0, %s126
      $region24: #{intrinsic_encoder_forward.9} parent=19 // pred_fallthru
        _
    $region20: #{intrinsic_encoder_forward.9} parent=5 // pred_fallthru
      _
    %p128 = scmp.le.s32.totalorder 1, %s8
    %p129 = scmp.lt.s32.totalorder %s8, 3
    %p130 = pnand %p128, %p129
    %p131 = pneg %p130
    // Predicated region
    $region25: #{intrinsic_encoder_forward.9} parent=5 // pred_check
      _
    $region26: #{intrinsic_encoder_forward.9} parent=5 // pred_check_branch
      %133 = sbr.rel (%p130) target = $region28
    $region27: #{intrinsic_encoder_forward.9} parent=5 // pred_region
      %s134 = ssub.s32 %s8, 1
      %p135 = scmp.lt.s32.totalorder %s17, 1
      %s136 = scalar_select %p135, %s17, 1
      %p137 = scmp.lt.s32.totalorder %s18, 0
      %s138 = scalar_select %p137, %s18, 0
      %s139 = smul.addr %s136, 9
      %s140 = sadd.s32 %s138, %s139
      %s141 = smul.addr %s140, 4
      %s142 = scalar_lea.vmem %s0, %s141
      %p143 = pneg %p48
      %p144 = pneg %p45
      %p145 = pneg %p69
      %p146 = pneg %p66
      %p147 = pneg %p95
      %p148 = pneg %p92
      %p149 = scmp.lt.s32.totalorder %s17, 1
      %s150 = scalar_select %p149, %s17, 1
      %s151 = smul.addr %s150, 2
      %s152 = smul.addr %s151, 4
      %s153 = scalar_lea.vmem %s2, %s152
      %p154 = scmp.lt.s32.totalorder %s17, 1
      %s155 = scalar_select %p154, %s17, 1
      %p156 = scmp.lt.s32.totalorder %s18, 0
      %s157 = scalar_select %p156, %s18, 0
      %s158 = smul.addr %s155, 9
      %s159 = sadd.s32 %s157, %s158
      %s160 = smul.addr %s159, 4
      %s161 = scalar_lea.vmem %s0, %s160
      %p162 = scmp.lt.s32.totalorder %s17, 1
      %s163 = scalar_select %p162, %s17, 1
      %s164 = smul.addr %s163, 2
      %s165 = smul.addr %s164, 4
      %s166 = scalar_lea.vmem %s2, %s165
      %v168 = vld [vmem:[%s1] sm:$0xf]
      %v169 = vld [vmem:[%s1 + $0x4] sm:$0xf]
      %v170 = vld [vmem:[%s161] sm:$0xf]
      %v171 = vld [vmem:[%s161 + $0x4] sm:$0xf]
      %v172 = vld [vmem:[%s161 + $0x8] sm:$0xf]
      %v173 = vld [vmem:[%s161 + $0xc] sm:$0xf]
      %v174 = vld [vmem:[%s161 + $0x10] sm:$0xf]
      %v175 = vld [vmem:[%s161 + $0x14] sm:$0xf]
      %v176 = vld [vmem:[%s161 + $0x18] sm:$0xf]
      %v177 = vld [vmem:[%s161 + $0x1c] sm:$0xf]
      %v178 = vld [vmem:[%s161 + $0x20] sm:$0xf]
      %v181 = vunpack.c.l.b16 %v168
      %v182 = vunpack.c.l.b16 %v169
      %v183 = vpack.c.b16 %v182, %v181
      %v193 = vunpack.c.l.b16 %v170
      %v194 = vunpack.c.l.b16 %v171
      %v195 = vunpack.c.l.b16 %v172
      %v196 = vunpack.c.l.b16 %v173
      %v197 = vunpack.c.l.b16 %v174
      %v198 = vunpack.c.l.b16 %v175
      %v199 = vunpack.c.l.b16 %v176
      %v200 = vunpack.c.l.b16 %v177
      %v201 = vunpack.c.l.b16 %v178
      %v202 = vpack.c.b16 %v194, %v193
      %v203 = vpack.c.b16 %v196, %v195
      %v204 = vpack.c.b16 %v198, %v197
      %v205 = vpack.c.b16 %v200, %v199
      %v206 = vpack.c.b16 %v201, %v201
      %vm211 = vcmask 588800
      %v213 = vsel %vm211, %v183, 0
      %vm215 = vcmask 1043456
      %v217 = vsel %vm215, %v206, 0
      %219 = vmatpush.bf16.msra.mxu0 0
      %220 = vmatpush.bf16.msra.mxu0 0
      %221 = vmatpush.bf16.msra.mxu0 0
      %222 = vmatpush.bf16.msra.mxu0 %v217
      %223 = vmatpush.bf16.msra.mxu0 %v205
      %224 = vmatpush.bf16.msra.mxu0 %v204
      %225 = vmatpush.bf16.msra.mxu0 %v203
      %226 = vmatpush.bf16.msra.mxu0 %v202
      %227 = vmatmul.bf16.gmra.mxu0 %v213
      %v228 = vpop.f32.mrf.mxu0
      %v229 = vadd.f32 0.0, %v228
      %v230 = vpop.f32.mrf.mxu0
      %v231 = vadd.f32 0.0, %v230
      %232 = vdwg.mxu0
      %s233 = smul.u32 %s18, 16
      %s234 = scalar_lea.vmem [#allocation2], %s233
      %vm235 = vcmask 523264
      %236 = vst.msk [vmem:[%s234] sm:$0xff] %vm235, %v229
      %237 = vst.msk [vmem:[%s234 + $0x8] sm:$0xff] %vm235, %v231
      %p238 = scmp.eq.s32.totalorder %s18, 0
      // Predicated region
      $region29: #{intrinsic_encoder_forward.9} parent=27 // pred_check
        %p239 = pneg %p238
      $region30: #{intrinsic_encoder_forward.9} parent=27 // pred_check_branch
        %241 = sbr.rel (%p239) target = $region32
      $region31: #{intrinsic_encoder_forward.9} parent=27 // pred_region
        %v242 = vld [vmem:[#allocation2] sm:$0xff]
        %v243 = vld [vmem:[#allocation2 + $0x8] sm:$0xff]
        %v244 = vsel %vm235, %v242, 0.0
        %245 = vadd.xlane.f32.xlu0 %v244
        %v246 = vpop.xlane.xlu0 %245
        %v247 = vsel %vm235, %v243, 0.0
        %248 = vadd.xlane.f32.xlu0 %v247
        %v249 = vpop.xlane.xlu0 %248
        %v250 = vadd.f32 %v246, 0.0
        %v251 = vadd.f32 %v249, 0.0
        %v252 = vmul.f32 %v250, 0.015625
        %v253 = vmul.f32 %v251, 0.015625
        %v254 = vsub.f32 %v242, %v252
        %v255 = vsub.f32 %v243, %v253
        %v256 = vmul.f32 %v254, %v254
        %v257 = vmul.f32 %v255, %v255
        %v258 = vsel %vm235, %v256, 0.0
        %259 = vadd.xlane.f32.xlu0 %v258
        %v260 = vpop.xlane.xlu0 %259
        %v261 = vsel %vm235, %v257, 0.0
        %262 = vadd.xlane.f32.xlu0 %v261
        %v263 = vpop.xlane.xlu0 %262
        %v264 = vadd.f32 %v260, 0.0
        %v265 = vadd.f32 %v263, 0.0
        %v266 = vmul.f32 %v264, 0.015625
        %v267 = vmul.f32 %v265, 0.015625
        %v268 = vadd.f32 %v266, 1e-05
        %v269 = vadd.f32 %v267, 1e-05
        %v270 = vrsqrt.pop %v268
        %v271 = vmul.f32 %v270, %v268
        %v272 = vmul.f32 %v271, %v270
        %v273 = vmul.f32 0.5, %v272
        %v274 = vsub.f32 1.5, %v273
        %v275 = vmul.f32 %v270, %v274
        %vm276 = vweird.f32 %v268
        %vm277 = vweird.f32 %v270
        %vm278 = vmor %vm276, %vm277
        %v279 = vsel %vm278, %v270, %v275
        %v280 = vrsqrt.pop %v269
        %v281 = vmul.f32 %v280, %v269
        %v282 = vmul.f32 %v281, %v280
        %v283 = vmul.f32 0.5, %v282
        %v284 = vsub.f32 1.5, %v283
        %v285 = vmul.f32 %v280, %v284
        %vm286 = vweird.f32 %v269
        %vm287 = vweird.f32 %v280
        %vm288 = vmor %vm286, %vm287
        %v289 = vsel %vm288, %v280, %v285
        %v290 = vmul.f32 %v254, %v279
        %v291 = vmul.f32 %v255, %v289
        %v292 = vmax.f32 %v290, 0.0
        %v293 = vmax.f32 %v291, 0.0
        %v294 = vpack.c.bf16 %v292, %v292
        %v295 = vpack.c.bf16 %v293, %v293
        %vm296 = vcmask 519168
        %297 = vst.msk [vmem:[%s166] sm:$0xf] %vm296, %v294
        %298 = vst.msk [vmem:[%s166 + $0x4] sm:$0xf] %vm296, %v295
      $region32: #{intrinsic_encoder_forward.9} parent=27 // pred_fallthru
        _
      %p299 = scmp.lt.s32.totalorder %s17, 1
      %s300 = scalar_select %p299, %s17, 1
      %s301 = smul.addr %s300, 2
      %s302 = smul.addr %s301, 4
      %s303 = scalar_lea.vmem %s2, %s302
      // Predicated region
      $region33: #{intrinsic_encoder_forward.9} parent=27 // pred_check
        %p304 = pneg %p92
      $region34: #{intrinsic_encoder_forward.9} parent=27 // pred_check_branch
        %306 = sbr.rel (%p304) target = $region36
      $region35: #{intrinsic_encoder_forward.9} parent=27 // pred_region
        _
      $region36: #{intrinsic_encoder_forward.9} parent=27 // pred_fallthru
        _
    $region28: #{intrinsic_encoder_forward.9} parent=5 // pred_fallthru
      _
    %p307 = scmp.le.s32.totalorder 2, %s8
    // Predicated region
    $region37: #{intrinsic_encoder_forward.9} parent=5 // pred_check
      %p308 = pneg %p307
    $region38: #{intrinsic_encoder_forward.9} parent=5 // pred_check_branch
      %310 = sbr.rel (%p308) target = $region40
    $region39: #{intrinsic_encoder_forward.9} parent=5 // pred_region
      %s311 = ssub.s32 %s8, 2
      // Predicated region
      $region41: #{intrinsic_encoder_forward.9} parent=39 // pred_check
        %p312 = pneg %p98
      $region42: #{intrinsic_encoder_forward.9} parent=39 // pred_check_branch
        %314 = sbr.rel (%p312) target = $region44
      $region43: #{intrinsic_encoder_forward.9} parent=39 // pred_region
        %p315 = scmp.lt.s32.totalorder %s19, 1
        %s316 = scalar_select %p315, %s19, 1
        %s317 = smul.addr %s316, 2
        %s318 = smul.addr %s317, 4
        %s319 = scalar_lea.vmem %s2, %s318
      $region44: #{intrinsic_encoder_forward.9} parent=39 // pred_fallthru
        _
    $region40: #{intrinsic_encoder_forward.9} parent=5 // pred_fallthru
      _
  $region6: #{intrinsic_encoder_forward.9} parent=0 // loop_footer
    %s12 = sadd.s32 1, %s8
  $region7: #{intrinsic_encoder_forward.9} parent=0 // loop_footer_branch
    %7 = sbr.rel target = $region3
  $region8: #{intrinsic_encoder_forward.9} parent=0 // loop_exit
    _

// kernel: intrinsic_encoder_forward.10
$region0: #{intrinsic_encoder_forward.10}
  #allocation0 [shape = 'u32[]', space=smem, size = 0x4, offset = 0x4, fixed_abs, tag = 'smem constant byte address 0x4 - core index']
  #allocation1 [shape = 'u32[72,128]{1,0:T(1,128)}', space=vmem, size = 0x9000, scoped, tag = 'internal scratch']
  #allocation2 [shape = 'f32[1,16,64]{2,1,0:T(8,128)}', space=vmem, size = 0x2000, scoped, tag = 'scratch operand']
  %s0 = inlined_call_operand.vmem [shape: bf16[2,144,64], index: 0, kind: input, shape index: {}]
  %s1 = inlined_call_operand.vmem [shape: bf16[16,144], index: 1, kind: input, shape index: {}]
  %s2 = inlined_call_operand.vmem [shape: bf16[2,16,64], index: 2, kind: output, shape index: {}]
  %s3 = sld [smem:[#allocation0]]
  $region45: #{intrinsic_encoder_forward.10} parent=0
    _
  %s5 = ssub.s32 1, %s3
  %s6 = scalar_select 0, %s5, %s3
  loop: start=0, step=1, limit=4
  $region2: #{intrinsic_encoder_forward.10} parent=0 // loop_pre_header
    _
  $region3: #{intrinsic_encoder_forward.10} parent=0 // loop_header
    %s8 = sphi 0, %s12
    %p9 = scmp.ge.s32.totalorder %s8, 4
    %s15 = sphi 0, %s27
    %s16 = sphi 0, %s23
    %s17 = sphi 0, %s15
    %s18 = sphi 0, %s16
    %s19 = sphi 0, %s17
    %s20 = sphi 0, %s18
    %s32 = sphi 0, %s34
    %s35 = sphi 0, %s32
    %s36 = sphi 0, %s35
    %s52 = sphi 0, %s36
    %s56 = sphi 0, %s56
    %s58 = sphi 0, %s56
    %s59 = sphi 0, %s58
    %s73 = sphi 0, %s59
    %s79 = sphi 0, %s81
    %s82 = sphi 0, %s79
    %s83 = sphi 0, %s82
    %s99 = sphi 0, %s83
  $region4: #{intrinsic_encoder_forward.10} parent=0 // loop_header_branch
    %11 = sbr.rel (%p9) target = $region8
  $region5: #{intrinsic_encoder_forward.10} parent=0 // loop_body
    %s13 = ssub.s32 %s8, 1
    %s14 = ssub.s32 %s8, 2
    %s21 = sadd.s32 1, %s16
    %p22 = scmp.ge.s32.totalorder %s21, 1
    %s23 = scalar_select %p22, 0, %s21
    %s24 = sadd.s32 1, %s15
    %s25 = scalar_select %p22, %s24, %s15
    %p26 = scmp.ge.s32.totalorder %s25, 2
    %s27 = scalar_select %p26, 0, %s25
    %s28 = ssub.s32 %s15, %s27
    %s29 = ssub.s32 %s16, %s23
    %s30 = sor.u32 %s28, %s29
    %p31 = scmp.eq.s32.totalorder %s30, 0
    %s33 = sadd.s32 %s32, 1
    %s34 = scalar_select %p31, %s32, %s33
    %p37 = pneg %p31
    %p38 = scmp.eq.s32.totalorder %s8, 1
    %p39 = por %p37, %p38
    %p40 = scmp.ne.s32.totalorder %s32, %s35
    %p41 = scmp.eq.s32.totalorder %s8, 0
    %p42 = por %p40, %p41
    %p43 = scmp.ne.s32.totalorder %s32, %s35
    %p44 = scmp.eq.s32.totalorder %s13, 1
    %p45 = por %p43, %p44
    %p46 = scmp.ne.s32.totalorder %s35, %s36
    %p47 = scmp.eq.s32.totalorder %s13, 0
    %p48 = por %p46, %p47
    %p49 = scmp.ne.s32.totalorder %s35, %s36
    %p50 = scmp.eq.s32.totalorder %s14, 1
    %p51 = por %p49, %p50
    %p53 = scmp.ne.s32.totalorder %s36, %s52
    %p54 = scmp.eq.s32.totalorder %s14, 0
    %p55 = por %p53, %p54
    %s57 = sadd.s32 %s56, 1
    %p60 = scmp.eq.s32.totalorder %s8, 1
    %p61 = scmp.ne.s32.totalorder %s56, %s58
    %p62 = scmp.eq.s32.totalorder %s8, 0
    %p63 = por %p61, %p62
    %p64 = scmp.ne.s32.totalorder %s56, %s58
    %p65 = scmp.eq.s32.totalorder %s13, 1
    %p66 = por %p64, %p65
    %p67 = scmp.ne.s32.totalorder %s58, %s59
    %p68 = scmp.eq.s32.totalorder %s13, 0
    %p69 = por %p67, %p68
    %p70 = scmp.ne.s32.totalorder %s58, %s59
    %p71 = scmp.eq.s32.totalorder %s14, 1
    %p72 = por %p70, %p71
    %p74 = scmp.ne.s32.totalorder %s59, %s73
    %p75 = scmp.eq.s32.totalorder %s14, 0
    %p76 = por %p74, %p75
    %s77 = ssub.s32 %s15, %s27
    %p78 = scmp.eq.s32.totalorder %s77, 0
    %s80 = sadd.s32 %s79, 1
    %s81 = scalar_select %p78, %s79, %s80
    %p84 = pneg %p78
    %p85 = scmp.eq.s32.totalorder %s8, 1
    %p86 = por %p84, %p85
    %p87 = scmp.ne.s32.totalorder %s79, %s82
    %p88 = scmp.eq.s32.totalorder %s8, 0
    %p89 = por %p87, %p88
    %p90 = scmp.ne.s32.totalorder %s79, %s82
    %p91 = scmp.eq.s32.totalorder %s13, 1
    %p92 = por %p90, %p91
    %p93 = scmp.ne.s32.totalorder %s82, %s83
    %p94 = scmp.eq.s32.totalorder %s13, 0
    %p95 = por %p93, %p94
    %p96 = scmp.ne.s32.totalorder %s82, %s83
    %p97 = scmp.eq.s32.totalorder %s14, 1
    %p98 = por %p96, %p97
    %p100 = scmp.ne.s32.totalorder %s83, %s99
    %p101 = scmp.eq.s32.totalorder %s14, 0
    %p102 = por %p100, %p101
    %p103 = scmp.le.s32.totalorder 1, %s8
    %p104 = scmp.lt.s32.totalorder %s8, 3
    %p105 = pnand %p103, %p104
    %p106 = pneg %p105
    // Predicated region
    $region9: #{intrinsic_encoder_forward.10} parent=5 // pred_check
      _
    $region10: #{intrinsic_encoder_forward.10} parent=5 // pred_check_branch
      %108 = sbr.rel (%p105) target = $region12
    $region11: #{intrinsic_encoder_forward.10} parent=5 // pred_region
      %s109 = ssub.s32 %s8, 1
      // Predicated region
      $region13: #{intrinsic_encoder_forward.10} parent=11 // pred_check
        %p110 = pneg %p69
      $region14: #{intrinsic_encoder_forward.10} parent=11 // pred_check_branch
        %112 = sbr.rel (%p110) target = $region16
      $region15: #{intrinsic_encoder_forward.10} parent=11 // pred_region
        _
      $region16: #{intrinsic_encoder_forward.10} parent=11 // pred_fallthru
        _
    $region12: #{intrinsic_encoder_forward.10} parent=5 // pred_fallthru
      _
    %p113 = scmp.lt.s32.totalorder %s8, 2
    // Predicated region
    $region17: #{intrinsic_encoder_forward.10} parent=5 // pred_check
      %p114 = pneg %p113
    $region18: #{intrinsic_encoder_forward.10} parent=5 // pred_check_branch
      %116 = sbr.rel (%p114) target = $region20
    $region19: #{intrinsic_encoder_forward.10} parent=5 // pred_region
      // Predicated region
      $region21: #{intrinsic_encoder_forward.10} parent=19 // pred_check
        %p117 = pneg %p42
      $region22: #{intrinsic_encoder_forward.10} parent=19 // pred_check_branch
        %119 = sbr.rel (%p117) target = $region24
      $region23: #{intrinsic_encoder_forward.10} parent=19 // pred_region
        %p120 = scmp.lt.s32.totalorder %s15, 1
        %s121 = scalar_select %p120, %s15, 1
        %p122 = scmp.lt.s32.totalorder %s16, 0
        %s123 = scalar_select %p122, %s16, 0
        %s124 = smul.addr %s121, 18
        %s125 = sadd.s32 %s123, %s124
        %s126 = smul.addr %s125, 4
        %s127 = scalar_lea.vmem %s0, %s126
      $region24: #{intrinsic_encoder_forward.10} parent=19 // pred_fallthru
        _
    $region20: #{intrinsic_encoder_forward.10} parent=5 // pred_fallthru
      _
    %p128 = scmp.le.s32.totalorder 1, %s8
    %p129 = scmp.lt.s32.totalorder %s8, 3
    %p130 = pnand %p128, %p129
    %p131 = pneg %p130
    // Predicated region
    $region25: #{intrinsic_encoder_forward.10} parent=5 // pred_check
      _
    $region26: #{intrinsic_encoder_forward.10} parent=5 // pred_check_branch
      %133 = sbr.rel (%p130) target = $region28
    $region27: #{intrinsic_encoder_forward.10} parent=5 // pred_region
      %s134 = ssub.s32 %s8, 1
      %p135 = scmp.lt.s32.totalorder %s17, 1
      %s136 = scalar_select %p135, %s17, 1
      %p137 = scmp.lt.s32.totalorder %s18, 0
      %s138 = scalar_select %p137, %s18, 0
      %s139 = smul.addr %s136, 18
      %s140 = sadd.s32 %s138, %s139
      %s141 = smul.addr %s140, 4
      %s142 = scalar_lea.vmem %s0, %s141
      %p143 = pneg %p48
      %p144 = pneg %p45
      %p145 = pneg %p69
      %p146 = pneg %p66
      %p147 = pneg %p95
      %p148 = pneg %p92
      %p149 = scmp.lt.s32.totalorder %s17, 1
      %s150 = scalar_select %p149, %s17, 1
      %s151 = smul.addr %s150, 2
      %s152 = smul.addr %s151, 4
      %s153 = scalar_lea.vmem %s2, %s152
      %p154 = scmp.lt.s32.totalorder %s17, 1
      %s155 = scalar_select %p154, %s17, 1
      %p156 = scmp.lt.s32.totalorder %s18, 0
      %s157 = scalar_select %p156, %s18, 0
      %s158 = smul.addr %s155, 18
      %s159 = sadd.s32 %s157, %s158
      %s160 = smul.addr %s159, 4
      %s161 = scalar_lea.vmem %s0, %s160
      %p162 = scmp.lt.s32.totalorder %s17, 1
      %s163 = scalar_select %p162, %s17, 1
      %s164 = smul.addr %s163, 2
      %s165 = smul.addr %s164, 4
      %s166 = scalar_lea.vmem %s2, %s165
      %v168 = vld [vmem:[%s1] sm:$0xff]
      %v169 = vld [vmem:[%s1 + $0x8] sm:$0xff]
      %v170 = vld [vmem:[%s161] sm:$0xf]
      %v171 = vld [vmem:[%s161 + $0x4] sm:$0xf]
      %v172 = vld [vmem:[%s161 + $0x8] sm:$0xf]
      %v173 = vld [vmem:[%s161 + $0xc] sm:$0xf]
      %v174 = vld [vmem:[%s161 + $0x10] sm:$0xf]
      %v175 = vld [vmem:[%s161 + $0x14] sm:$0xf]
      %v176 = vld [vmem:[%s161 + $0x18] sm:$0xf]
      %v177 = vld [vmem:[%s161 + $0x1c] sm:$0xf]
      %v178 = vld [vmem:[%s161 + $0x20] sm:$0xf]
      %v179 = vld [vmem:[%s161 + $0x24] sm:$0xf]
      %v180 = vld [vmem:[%s161 + $0x28] sm:$0xf]
      %v181 = vld [vmem:[%s161 + $0x2c] sm:$0xf]
      %v182 = vld [vmem:[%s161 + $0x30] sm:$0xf]
      %v183 = vld [vmem:[%s161 + $0x34] sm:$0xf]
      %v184 = vld [vmem:[%s161 + $0x38] sm:$0xf]
      %v185 = vld [vmem:[%s161 + $0x3c] sm:$0xf]
      %v186 = vld [vmem:[%s161 + $0x40] sm:$0xf]
      %v187 = vld [vmem:[%s161 + $0x44] sm:$0xf]
      %v190 = vunpack.c.l.b16 %v168
      %v191 = vunpack.c.h.b16 %v168
      %v192 = vunpack.c.l.b16 %v169
      %v193 = vunpack.c.h.b16 %v169
      %v194 = vpack.c.b16 %v192, %v190
      %v195 = vpack.c.b16 %v193, %v191
      %v215 = vunpack.c.l.b16 %v170
      %v216 = vunpack.c.l.b16 %v171
      %v217 = vunpack.c.l.b16 %v172
      %v218 = vunpack.c.l.b16 %v173
      %v219 = vunpack.c.l.b16 %v174
      %v220 = vunpack.c.l.b16 %v175
      %v221 = vunpack.c.l.b16 %v176
      %v222 = vunpack.c.l.b16 %v177
      %v223 = vunpack.c.l.b16 %v178
      %v224 = vunpack.c.l.b16 %v179
      %v225 = vunpack.c.l.b16 %v180
      %v226 = vunpack.c.l.b16 %v181
      %v227 = vunpack.c.l.b16 %v182
      %v228 = vunpack.c.l.b16 %v183
      %v229 = vunpack.c.l.b16 %v184
      %v230 = vunpack.c.l.b16 %v185
      %v231 = vunpack.c.l.b16 %v186
      %v232 = vunpack.c.l.b16 %v187
      %v233 = vpack.c.b16 %v216, %v215
      %v234 = vpack.c.b16 %v218, %v217
      %v235 = vpack.c.b16 %v220, %v219
      %v236 = vpack.c.b16 %v222, %v221
      %v237 = vpack.c.b16 %v224, %v223
      %v238 = vpack.c.b16 %v226, %v225
      %v239 = vpack.c.b16 %v228, %v227
      %v240 = vpack.c.b16 %v230, %v229
      %v241 = vpack.c.b16 %v232, %v231
      %vm251 = vcmask 130048
      %v253 = vsel %vm251, %v195, 0
      %255 = vmatpush.bf16.msra.mxu0 %v240
      %256 = vmatpush.bf16.msra.mxu0 %v239
      %257 = vmatpush.bf16.msra.mxu0 %v238
      %258 = vmatpush.bf16.msra.mxu0 %v237
      %259 = vmatpush.bf16.msra.mxu0 %v236
      %260 = vmatpush.bf16.msra.mxu0 %v235
      %261 = vmatpush.bf16.msra.mxu0 %v234
      %262 = vmatpush.bf16.msra.mxu0 %v233
      %263 = vmatmul.bf16.gmra.mxu0 %v194
      %v264 = vpop.f32.mrf.mxu0
      %v265 = vadd.f32 0.0, %v264
      %v266 = vpop.f32.mrf.mxu0
      %v267 = vadd.f32 0.0, %v266
      %268 = vdwg.mxu0
      %269 = vmatpush.bf16.msra.mxu0 0
      %270 = vmatpush.bf16.msra.mxu0 0
      %271 = vmatpush.bf16.msra.mxu0 0
      %272 = vmatpush.bf16.msra.mxu0 0
      %273 = vmatpush.bf16.msra.mxu0 0
      %274 = vmatpush.bf16.msra.mxu0 0
      %275 = vmatpush.bf16.msra.mxu0 0
      %276 = vmatpush.bf16.msra.mxu0 %v241
      %277 = vmatmul.bf16.gmra.mxu0 %v253
      %v278 = vpop.f32.mrf.mxu0
      %v279 = vadd.f32 %v265, %v278
      %v280 = vpop.f32.mrf.mxu0
      %v281 = vadd.f32 %v267, %v280
      %282 = vdwg.mxu0
      %s283 = smul.u32 %s18, 16
      %s284 = scalar_lea.vmem [#allocation2], %s283
      %vm285 = vcmask 523264
      %286 = vst.msk [vmem:[%s284] sm:$0xff] %vm285, %v279
      %287 = vst.msk [vmem:[%s284 + $0x8] sm:$0xff] %vm285, %v281
      %p288 = scmp.eq.s32.totalorder %s18, 0
      // Predicated region
      $region29: #{intrinsic_encoder_forward.10} parent=27 // pred_check
        %p289 = pneg %p288
      $region30: #{intrinsic_encoder_forward.10} parent=27 // pred_check_branch
        %291 = sbr.rel (%p289) target = $region32
      $region31: #{intrinsic_encoder_forward.10} parent=27 // pred_region
        %v292 = vld [vmem:[#allocation2] sm:$0xff]
        %v293 = vld [vmem:[#allocation2 + $0x8] sm:$0xff]
        %v294 = vsel %vm285, %v292, 0.0
        %295 = vadd.xlane.f32.xlu0 %v294
        %v296 = vpop.xlane.xlu0 %295
        %v297 = vsel %vm285, %v293, 0.0
        %298 = vadd.xlane.f32.xlu0 %v297
        %v299 = vpop.xlane.xlu0 %298
        %v300 = vadd.f32 %v296, 0.0
        %v301 = vadd.f32 %v299, 0.0
        %v302 = vmul.f32 %v300, 0.015625
        %v303 = vmul.f32 %v301, 0.015625
        %v304 = vsub.f32 %v292, %v302
        %v305 = vsub.f32 %v293, %v303
        %v306 = vmul.f32 %v304, %v304
        %v307 = vmul.f32 %v305, %v305
        %v308 = vsel %vm285, %v306, 0.0
        %309 = vadd.xlane.f32.xlu0 %v308
        %v310 = vpop.xlane.xlu0 %309
        %v311 = vsel %vm285, %v307, 0.0
        %312 = vadd.xlane.f32.xlu0 %v311
        %v313 = vpop.xlane.xlu0 %312
        %v314 = vadd.f32 %v310, 0.0
        %v315 = vadd.f32 %v313, 0.0
        %v316 = vmul.f32 %v314, 0.015625
        %v317 = vmul.f32 %v315, 0.015625
        %v318 = vadd.f32 %v316, 1e-05
        %v319 = vadd.f32 %v317, 1e-05
        %v320 = vrsqrt.pop %v318
        %v321 = vmul.f32 %v320, %v318
        %v322 = vmul.f32 %v321, %v320
        %v323 = vmul.f32 0.5, %v322
        %v324 = vsub.f32 1.5, %v323
        %v325 = vmul.f32 %v320, %v324
        %vm326 = vweird.f32 %v318
        %vm327 = vweird.f32 %v320
        %vm328 = vmor %vm326, %vm327
        %v329 = vsel %vm328, %v320, %v325
        %v330 = vrsqrt.pop %v319
        %v331 = vmul.f32 %v330, %v319
        %v332 = vmul.f32 %v331, %v330
        %v333 = vmul.f32 0.5, %v332
        %v334 = vsub.f32 1.5, %v333
        %v335 = vmul.f32 %v330, %v334
        %vm336 = vweird.f32 %v319
        %vm337 = vweird.f32 %v330
        %vm338 = vmor %vm336, %vm337
        %v339 = vsel %vm338, %v330, %v335
        %v340 = vmul.f32 %v304, %v329
        %v341 = vmul.f32 %v305, %v339
        %vm342 = vcmp.ge.f32.partialorder %v340, 0.0
        %vm343 = vcmp.ge.f32.partialorder %v341, 0.0
        %v344 = vmul.f32 %v340, 0.1
        %v345 = vmul.f32 %v341, 0.1
        %v346 = vsel %vm342, %v340, %v344
        %v347 = vsel %vm343, %v341, %v345
        %v348 = vpack.c.bf16 %v346, %v346
        %v349 = vpack.c.bf16 %v347, %v347
        %vm350 = vcmask 519168
        %351 = vst.msk [vmem:[%s166] sm:$0xf] %vm350, %v348
        %352 = vst.msk [vmem:[%s166 + $0x4] sm:$0xf] %vm350, %v349
      $region32: #{intrinsic_encoder_forward.10} parent=27 // pred_fallthru
        _
      %p353 = scmp.lt.s32.totalorder %s17, 1
      %s354 = scalar_select %p353, %s17, 1
      %s355 = smul.addr %s354, 2
      %s356 = smul.addr %s355, 4
      %s357 = scalar_lea.vmem %s2, %s356
      // Predicated region
      $region33: #{intrinsic_encoder_forward.10} parent=27 // pred_check
        %p358 = pneg %p92
      $region34: #{intrinsic_encoder_forward.10} parent=27 // pred_check_branch
        %360 = sbr.rel (%p358) target = $region36
      $region35: #{intrinsic_encoder_forward.10} parent=27 // pred_region
        _
      $region36: #{intrinsic_encoder_forward.10} parent=27 // pred_fallthru
        _
    $region28: #{intrinsic_encoder_forward.10} parent=5 // pred_fallthru
      _
    %p361 = scmp.le.s32.totalorder 2, %s8
    // Predicated region
    $region37: #{intrinsic_encoder_forward.10} parent=5 // pred_check
      %p362 = pneg %p361
    $region38: #{intrinsic_encoder_forward.10} parent=5 // pred_check_branch
      %364 = sbr.rel (%p362) target = $region40
    $region39: #{intrinsic_encoder_forward.10} parent=5 // pred_region
      %s365 = ssub.s32 %s8, 2
      // Predicated region
      $region41: #{intrinsic_encoder_forward.10} parent=39 // pred_check
        %p366 = pneg %p98
      $region42: #{intrinsic_encoder_forward.10} parent=39 // pred_check_branch
        %368 = sbr.rel (%p366) target = $region44
      $region43: #{intrinsic_encoder_forward.10} parent=39 // pred_region
        %p369 = scmp.lt.s32.totalorder %s19, 1
        %s370 = scalar_select %p369, %s19, 1
        %s371 = smul.addr %s370, 2
        %s372 = smul.addr %s371, 4
        %s373 = scalar_lea.vmem %s2, %s372
      $region44: #{intrinsic_encoder_forward.10} parent=39 // pred_fallthru
        _
    $region40: #{intrinsic_encoder_forward.10} parent=5 // pred_fallthru
      _
  $region6: #{intrinsic_encoder_forward.10} parent=0 // loop_footer
    %s12 = sadd.s32 1, %s8
  $region7: #{intrinsic_encoder_forward.10} parent=0 // loop_footer_branch
    %7 = sbr.rel target = $region3
  $region8: #{intrinsic_encoder_forward.10} parent=0 // loop_exit
    _

// kernel: intrinsic_encoder_forward.11
$region0: #{intrinsic_encoder_forward.11}
  #allocation0 [shape = 'u32[]', space=smem, size = 0x4, offset = 0x4, fixed_abs, tag = 'smem constant byte address 0x4 - core index']
  #allocation1 [shape = 'u32[72,128]{1,0:T(1,128)}', space=vmem, size = 0x9000, scoped, tag = 'internal scratch']
  #allocation2 [shape = 'f32[1,16,64]{2,1,0:T(8,128)}', space=vmem, size = 0x2000, scoped, tag = 'scratch operand']
  %s0 = inlined_call_operand.vmem [shape: bf16[2,144,64], index: 0, kind: input, shape index: {}]
  %s1 = inlined_call_operand.vmem [shape: bf16[16,144], index: 1, kind: input, shape index: {}]
  %s2 = inlined_call_operand.vmem [shape: bf16[2,16,64], index: 2, kind: input, shape index: {}]
  %s3 = inlined_call_operand.vmem [shape: bf16[2,16,64], index: 3, kind: output, shape index: {}]
  %s4 = sld [smem:[#allocation0]]
  $region49: #{intrinsic_encoder_forward.11} parent=0
    _
  %s6 = ssub.s32 1, %s4
  %s7 = scalar_select 0, %s6, %s4
  loop: start=0, step=1, limit=4
  $region2: #{intrinsic_encoder_forward.11} parent=0 // loop_pre_header
    _
  $region3: #{intrinsic_encoder_forward.11} parent=0 // loop_header
    %s9 = sphi 0, %s13
    %p10 = scmp.ge.s32.totalorder %s9, 4
    %s16 = sphi 0, %s28
    %s17 = sphi 0, %s24
    %s18 = sphi 0, %s16
    %s19 = sphi 0, %s17
    %s20 = sphi 0, %s18
    %s21 = sphi 0, %s19
    %s33 = sphi 0, %s35
    %s36 = sphi 0, %s33
    %s37 = sphi 0, %s36
    %s53 = sphi 0, %s37
    %s57 = sphi 0, %s57
    %s59 = sphi 0, %s57
    %s60 = sphi 0, %s59
    %s74 = sphi 0, %s60
    %s80 = sphi 0, %s82
    %s83 = sphi 0, %s80
    %s84 = sphi 0, %s83
    %s100 = sphi 0, %s84
    %s106 = sphi 0, %s108
    %s109 = sphi 0, %s106
    %s110 = sphi 0, %s109
    %s126 = sphi 0, %s110
  $region4: #{intrinsic_encoder_forward.11} parent=0 // loop_header_branch
    %12 = sbr.rel (%p10) target = $region8
  $region5: #{intrinsic_encoder_forward.11} parent=0 // loop_body
    %s14 = ssub.s32 %s9, 1
    %s15 = ssub.s32 %s9, 2
    %s22 = sadd.s32 1, %s17
    %p23 = scmp.ge.s32.totalorder %s22, 1
    %s24 = scalar_select %p23, 0, %s22
    %s25 = sadd.s32 1, %s16
    %s26 = scalar_select %p23, %s25, %s16
    %p27 = scmp.ge.s32.totalorder %s26, 2
    %s28 = scalar_select %p27, 0, %s26
    %s29 = ssub.s32 %s16, %s28
    %s30 = ssub.s32 %s17, %s24
    %s31 = sor.u32 %s29, %s30
    %p32 = scmp.eq.s32.totalorder %s31, 0
    %s34 = sadd.s32 %s33, 1
    %s35 = scalar_select %p32, %s33, %s34
    %p38 = pneg %p32
    %p39 = scmp.eq.s32.totalorder %s9, 1
    %p40 = por %p38, %p39
    %p41 = scmp.ne.s32.totalorder %s33, %s36
    %p42 = scmp.eq.s32.totalorder %s9, 0
    %p43 = por %p41, %p42
    %p44 = scmp.ne.s32.totalorder %s33, %s36
    %p45 = scmp.eq.s32.totalorder %s14, 1
    %p46 = por %p44, %p45
    %p47 = scmp.ne.s32.totalorder %s36, %s37
    %p48 = scmp.eq.s32.totalorder %s14, 0
    %p49 = por %p47, %p48
    %p50 = scmp.ne.s32.totalorder %s36, %s37
    %p51 = scmp.eq.s32.totalorder %s15, 1
    %p52 = por %p50, %p51
    %p54 = scmp.ne.s32.totalorder %s37, %s53
    %p55 = scmp.eq.s32.totalorder %s15, 0
    %p56 = por %p54, %p55
    %s58 = sadd.s32 %s57, 1
    %p61 = scmp.eq.s32.totalorder %s9, 1
    %p62 = scmp.ne.s32.totalorder %s57, %s59
    %p63 = scmp.eq.s32.totalorder %s9, 0
    %p64 = por %p62, %p63
    %p65 = scmp.ne.s32.totalorder %s57, %s59
    %p66 = scmp.eq.s32.totalorder %s14, 1
    %p67 = por %p65, %p66
    %p68 = scmp.ne.s32.totalorder %s59, %s60
    %p69 = scmp.eq.s32.totalorder %s14, 0
    %p70 = por %p68, %p69
    %p71 = scmp.ne.s32.totalorder %s59, %s60
    %p72 = scmp.eq.s32.totalorder %s15, 1
    %p73 = por %p71, %p72
    %p75 = scmp.ne.s32.totalorder %s60, %s74
    %p76 = scmp.eq.s32.totalorder %s15, 0
    %p77 = por %p75, %p76
    %s78 = ssub.s32 %s16, %s28
    %p79 = scmp.eq.s32.totalorder %s78, 0
    %s81 = sadd.s32 %s80, 1
    %s82 = scalar_select %p79, %s80, %s81
    %p85 = pneg %p79
    %p86 = scmp.eq.s32.totalorder %s9, 1
    %p87 = por %p85, %p86
    %p88 = scmp.ne.s32.totalorder %s80, %s83
    %p89 = scmp.eq.s32.totalorder %s9, 0
    %p90 = por %p88, %p89
    %p91 = scmp.ne.s32.totalorder %s80, %s83
    %p92 = scmp.eq.s32.totalorder %s14, 1
    %p93 = por %p91, %p92
    %p94 = scmp.ne.s32.totalorder %s83, %s84
    %p95 = scmp.eq.s32.totalorder %s14, 0
    %p96 = por %p94, %p95
    %p97 = scmp.ne.s32.totalorder %s83, %s84
    %p98 = scmp.eq.s32.totalorder %s15, 1
    %p99 = por %p97, %p98
    %p101 = scmp.ne.s32.totalorder %s84, %s100
    %p102 = scmp.eq.s32.totalorder %s15, 0
    %p103 = por %p101, %p102
    %s104 = ssub.s32 %s16, %s28
    %p105 = scmp.eq.s32.totalorder %s104, 0
    %s107 = sadd.s32 %s106, 1
    %s108 = scalar_select %p105, %s106, %s107
    %p111 = pneg %p105
    %p112 = scmp.eq.s32.totalorder %s9, 1
    %p113 = por %p111, %p112
    %p114 = scmp.ne.s32.totalorder %s106, %s109
    %p115 = scmp.eq.s32.totalorder %s9, 0
    %p116 = por %p114, %p115
    %p117 = scmp.ne.s32.totalorder %s106, %s109
    %p118 = scmp.eq.s32.totalorder %s14, 1
    %p119 = por %p117, %p118
    %p120 = scmp.ne.s32.totalorder %s109, %s110
    %p121 = scmp.eq.s32.totalorder %s14, 0
    %p122 = por %p120, %p121
    %p123 = scmp.ne.s32.totalorder %s109, %s110
    %p124 = scmp.eq.s32.totalorder %s15, 1
    %p125 = por %p123, %p124
    %p127 = scmp.ne.s32.totalorder %s110, %s126
    %p128 = scmp.eq.s32.totalorder %s15, 0
    %p129 = por %p127, %p128
    %p130 = scmp.le.s32.totalorder 1, %s9
    %p131 = scmp.lt.s32.totalorder %s9, 3
    %p132 = pnand %p130, %p131
    %p133 = pneg %p132
    // Predicated region
    $region9: #{intrinsic_encoder_forward.11} parent=5 // pred_check
      _
    $region10: #{intrinsic_encoder_forward.11} parent=5 // pred_check_branch
      %135 = sbr.rel (%p132) target = $region12
    $region11: #{intrinsic_encoder_forward.11} parent=5 // pred_region
      %s136 = ssub.s32 %s9, 1
      // Predicated region
      $region13: #{intrinsic_encoder_forward.11} parent=11 // pred_check
        %p137 = pneg %p70
      $region14: #{intrinsic_encoder_forward.11} parent=11 // pred_check_branch
        %139 = sbr.rel (%p137) target = $region16
      $region15: #{intrinsic_encoder_forward.11} parent=11 // pred_region
        _
      $region16: #{intrinsic_encoder_forward.11} parent=11 // pred_fallthru
        _
    $region12: #{intrinsic_encoder_forward.11} parent=5 // pred_fallthru
      _
    %p140 = scmp.lt.s32.totalorder %s9, 2
    // Predicated region
    $region17: #{intrinsic_encoder_forward.11} parent=5 // pred_check
      %p141 = pneg %p140
    $region18: #{intrinsic_encoder_forward.11} parent=5 // pred_check_branch
      %143 = sbr.rel (%p141) target = $region20
    $region19: #{intrinsic_encoder_forward.11} parent=5 // pred_region
      // Predicated region
      $region21: #{intrinsic_encoder_forward.11} parent=19 // pred_check
        %p144 = pneg %p43
      $region22: #{intrinsic_encoder_forward.11} parent=19 // pred_check_branch
        %146 = sbr.rel (%p144) target = $region24
      $region23: #{intrinsic_encoder_forward.11} parent=19 // pred_region
        %p147 = scmp.lt.s32.totalorder %s16, 1
        %s148 = scalar_select %p147, %s16, 1
        %p149 = scmp.lt.s32.totalorder %s17, 0
        %s150 = scalar_select %p149, %s17, 0
        %s151 = smul.addr %s148, 18
        %s152 = sadd.s32 %s150, %s151
        %s153 = smul.addr %s152, 4
        %s154 = scalar_lea.vmem %s0, %s153
      $region24: #{intrinsic_encoder_forward.11} parent=19 // pred_fallthru
        _
      // Predicated region
      $region25: #{intrinsic_encoder_forward.11} parent=19 // pred_check
        %p155 = pneg %p90
      $region26: #{intrinsic_encoder_forward.11} parent=19 // pred_check_branch
        %157 = sbr.rel (%p155) target = $region28
      $region27: #{intrinsic_encoder_forward.11} parent=19 // pred_region
        %p158 = scmp.lt.s32.totalorder %s16, 1
        %s159 = scalar_select %p158, %s16, 1
        %s160 = smul.addr %s159, 2
        %s161 = smul.addr %s160, 4
        %s162 = scalar_lea.vmem %s2, %s161
      $region28: #{intrinsic_encoder_forward.11} parent=19 // pred_fallthru
        _
    $region20: #{intrinsic_encoder_forward.11} parent=5 // pred_fallthru
      _
    %p163 = scmp.le.s32.totalorder 1, %s9
    %p164 = scmp.lt.s32.totalorder %s9, 3
    %p165 = pnand %p163, %p164
    %p166 = pneg %p165
    // Predicated region
    $region29: #{intrinsic_encoder_forward.11} parent=5 // pred_check
      _
    $region30: #{intrinsic_encoder_forward.11} parent=5 // pred_check_branch
      %168 = sbr.rel (%p165) target = $region32
    $region31: #{intrinsic_encoder_forward.11} parent=5 // pred_region
      %s169 = ssub.s32 %s9, 1
      %p170 = scmp.lt.s32.totalorder %s18, 1
      %s171 = scalar_select %p170, %s18, 1
      %p172 = scmp.lt.s32.totalorder %s19, 0
      %s173 = scalar_select %p172, %s19, 0
      %s174 = smul.addr %s171, 18
      %s175 = sadd.s32 %s173, %s174
      %s176 = smul.addr %s175, 4
      %s177 = scalar_lea.vmem %s0, %s176
      %p178 = pneg %p49
      %p179 = pneg %p46
      %p180 = pneg %p70
      %p181 = pneg %p67
      %p182 = scmp.lt.s32.totalorder %s18, 1
      %s183 = scalar_select %p182, %s18, 1
      %s184 = smul.addr %s183, 2
      %s185 = smul.addr %s184, 4
      %s186 = scalar_lea.vmem %s2, %s185
      %p187 = pneg %p96
      %p188 = pneg %p93
      %p189 = pneg %p122
      %p190 = pneg %p119
      %p191 = scmp.lt.s32.totalorder %s18, 1
      %s192 = scalar_select %p191, %s18, 1
      %s193 = smul.addr %s192, 2
      %s194 = smul.addr %s193, 4
      %s195 = scalar_lea.vmem %s3, %s194
      %p196 = scmp.lt.s32.totalorder %s18, 1
      %s197 = scalar_select %p196, %s18, 1
      %p198 = scmp.lt.s32.totalorder %s19, 0
      %s199 = scalar_select %p198, %s19, 0
      %s200 = smul.addr %s197, 18
      %s201 = sadd.s32 %s199, %s200
      %s202 = smul.addr %s201, 4
      %s203 = scalar_lea.vmem %s0, %s202
      %p204 = scmp.lt.s32.totalorder %s18, 1
      %s205 = scalar_select %p204, %s18, 1
      %s206 = smul.addr %s205, 2
      %s207 = smul.addr %s206, 4
      %s208 = scalar_lea.vmem %s2, %s207
      %p209 = scmp.lt.s32.totalorder %s18, 1
      %s210 = scalar_select %p209, %s18, 1
      %s211 = smul.addr %s210, 2
      %s212 = smul.addr %s211, 4
      %s213 = scalar_lea.vmem %s3, %s212
      %v215 = vld [vmem:[%s1] sm:$0xff]
      %v216 = vld [vmem:[%s1 + $0x8] sm:$0xff]
      %v217 = vld [vmem:[%s203] sm:$0xf]
      %v218 = vld [vmem:[%s203 + $0x4] sm:$0xf]
      %v219 = vld [vmem:[%s203 + $0x8] sm:$0xf]
      %v220 = vld [vmem:[%s203 + $0xc] sm:$0xf]
      %v221 = vld [vmem:[%s203 + $0x10] sm:$0xf]
      %v222 = vld [vmem:[%s203 + $0x14] sm:$0xf]
      %v223 = vld [vmem:[%s203 + $0x18] sm:$0xf]
      %v224 = vld [vmem:[%s203 + $0x1c] sm:$0xf]
      %v225 = vld [vmem:[%s203 + $0x20] sm:$0xf]
      %v226 = vld [vmem:[%s203 + $0x24] sm:$0xf]
      %v227 = vld [vmem:[%s203 + $0x28] sm:$0xf]
      %v228 = vld [vmem:[%s203 + $0x2c] sm:$0xf]
      %v229 = vld [vmem:[%s203 + $0x30] sm:$0xf]
      %v230 = vld [vmem:[%s203 + $0x34] sm:$0xf]
      %v231 = vld [vmem:[%s203 + $0x38] sm:$0xf]
      %v232 = vld [vmem:[%s203 + $0x3c] sm:$0xf]
      %v233 = vld [vmem:[%s203 + $0x40] sm:$0xf]
      %v234 = vld [vmem:[%s203 + $0x44] sm:$0xf]
      %v237 = vunpack.c.l.b16 %v215
      %v238 = vunpack.c.h.b16 %v215
      %v239 = vunpack.c.l.b16 %v216
      %v240 = vunpack.c.h.b16 %v216
      %v241 = vpack.c.b16 %v239, %v237
      %v242 = vpack.c.b16 %v240, %v238
      %v262 = vunpack.c.l.b16 %v217
      %v263 = vunpack.c.l.b16 %v218
      %v264 = vunpack.c.l.b16 %v219
      %v265 = vunpack.c.l.b16 %v220
      %v266 = vunpack.c.l.b16 %v221
      %v267 = vunpack.c.l.b16 %v222
      %v268 = vunpack.c.l.b16 %v223
      %v269 = vunpack.c.l.b16 %v224
      %v270 = vunpack.c.l.b16 %v225
      %v271 = vunpack.c.l.b16 %v226
      %v272 = vunpack.c.l.b16 %v227
      %v273 = vunpack.c.l.b16 %v228
      %v274 = vunpack.c.l.b16 %v229
      %v275 = vunpack.c.l.b16 %v230
      %v276 = vunpack.c.l.b16 %v231
      %v277 = vunpack.c.l.b16 %v232
      %v278 = vunpack.c.l.b16 %v233
      %v279 = vunpack.c.l.b16 %v234
      %v280 = vpack.c.b16 %v263, %v262
      %v281 = vpack.c.b16 %v265, %v264
      %v282 = vpack.c.b16 %v267, %v266
      %v283 = vpack.c.b16 %v269, %v268
      %v284 = vpack.c.b16 %v271, %v270
      %v285 = vpack.c.b16 %v273, %v272
      %v286 = vpack.c.b16 %v275, %v274
      %v287 = vpack.c.b16 %v277, %v276
      %v288 = vpack.c.b16 %v279, %v278
      %vm298 = vcmask 130048
      %v300 = vsel %vm298, %v242, 0
      %302 = vmatpush.bf16.msra.mxu0 %v287
      %303 = vmatpush.bf16.msra.mxu0 %v286
      %304 = vmatpush.bf16.msra.mxu0 %v285
      %305 = vmatpush.bf16.msra.mxu0 %v284
      %306 = vmatpush.bf16.msra.mxu0 %v283
      %307 = vmatpush.bf16.msra.mxu0 %v282
      %308 = vmatpush.bf16.msra.mxu0 %v281
      %309 = vmatpush.bf16.msra.mxu0 %v280
      %310 = vmatmul.bf16.gmra.mxu0 %v241
      %v311 = vpop.f32.mrf.mxu0
      %v312 = vadd.f32 0.0, %v311
      %v313 = vpop.f32.mrf.mxu0
      %v314 = vadd.f32 0.0, %v313
      %315 = vdwg.mxu0
      %316 = vmatpush.bf16.msra.mxu0 0
      %317 = vmatpush.bf16.msra.mxu0 0
      %318 = vmatpush.bf16.msra.mxu0 0
      %319 = vmatpush.bf16.msra.mxu0 0
      %320 = vmatpush.bf16.msra.mxu0 0
      %321 = vmatpush.bf16.msra.mxu0 0
      %322 = vmatpush.bf16.msra.mxu0 0
      %323 = vmatpush.bf16.msra.mxu0 %v288
      %324 = vmatmul.bf16.gmra.mxu0 %v300
      %v325 = vpop.f32.mrf.mxu0
      %v326 = vadd.f32 %v312, %v325
      %v327 = vpop.f32.mrf.mxu0
      %v328 = vadd.f32 %v314, %v327
      %329 = vdwg.mxu0
      %s330 = smul.u32 %s19, 16
      %s331 = scalar_lea.vmem [#allocation2], %s330
      %vm332 = vcmask 523264
      %333 = vst.msk [vmem:[%s331] sm:$0xff] %vm332, %v326
      %334 = vst.msk [vmem:[%s331 + $0x8] sm:$0xff] %vm332, %v328
      %p335 = scmp.eq.s32.totalorder %s19, 0
      // Predicated region
      $region33: #{intrinsic_encoder_forward.11} parent=31 // pred_check
        %p336 = pneg %p335
      $region34: #{intrinsic_encoder_forward.11} parent=31 // pred_check_branch
        %338 = sbr.rel (%p336) target = $region36
      $region35: #{intrinsic_encoder_forward.11} parent=31 // pred_region
        %v339 = vld [vmem:[#allocation2] sm:$0xff]
        %v340 = vld [vmem:[#allocation2 + $0x8] sm:$0xff]
        %v341 = vsel %vm332, %v339, 0.0
        %342 = vadd.xlane.f32.xlu0 %v341
        %v343 = vpop.xlane.xlu0 %342
        %v344 = vsel %vm332, %v340, 0.0
        %345 = vadd.xlane.f32.xlu0 %v344
        %v346 = vpop.xlane.xlu0 %345
        %v347 = vadd.f32 %v343, 0.0
        %v348 = vadd.f32 %v346, 0.0
        %v349 = vmul.f32 %v347, 0.015625
        %v350 = vmul.f32 %v348, 0.015625
        %v351 = vsub.f32 %v339, %v349
        %v352 = vsub.f32 %v340, %v350
        %v353 = vmul.f32 %v351, %v351
        %v354 = vmul.f32 %v352, %v352
        %v355 = vsel %vm332, %v353, 0.0
        %356 = vadd.xlane.f32.xlu0 %v355
        %v357 = vpop.xlane.xlu0 %356
        %v358 = vsel %vm332, %v354, 0.0
        %359 = vadd.xlane.f32.xlu0 %v358
        %v360 = vpop.xlane.xlu0 %359
        %v361 = vadd.f32 %v357, 0.0
        %v362 = vadd.f32 %v360, 0.0
        %v363 = vmul.f32 %v361, 0.015625
        %v364 = vmul.f32 %v362, 0.015625
        %v365 = vadd.f32 %v363, 1e-05
        %v366 = vadd.f32 %v364, 1e-05
        %v367 = vrsqrt.pop %v365
        %v368 = vmul.f32 %v367, %v365
        %v369 = vmul.f32 %v368, %v367
        %v370 = vmul.f32 0.5, %v369
        %v371 = vsub.f32 1.5, %v370
        %v372 = vmul.f32 %v367, %v371
        %vm373 = vweird.f32 %v365
        %vm374 = vweird.f32 %v367
        %vm375 = vmor %vm373, %vm374
        %v376 = vsel %vm375, %v367, %v372
        %v377 = vrsqrt.pop %v366
        %v378 = vmul.f32 %v377, %v366
        %v379 = vmul.f32 %v378, %v377
        %v380 = vmul.f32 0.5, %v379
        %v381 = vsub.f32 1.5, %v380
        %v382 = vmul.f32 %v377, %v381
        %vm383 = vweird.f32 %v366
        %vm384 = vweird.f32 %v377
        %vm385 = vmor %vm383, %vm384
        %v386 = vsel %vm385, %v377, %v382
        %v387 = vmul.f32 %v351, %v376
        %v388 = vmul.f32 %v352, %v386
        %v389 = vld [vmem:[%s208] sm:$0xf]
        %v390 = vld [vmem:[%s208 + $0x4] sm:$0xf]
        %v391 = vunpack.c.l.bf16 %v389
        %v392 = vunpack.c.l.bf16 %v390
        %v393 = vadd.f32 %v387, %v391
        %v394 = vadd.f32 %v388, %v392
        %v395 = vpack.c.bf16 %v393, %v393
        %v396 = vpack.c.bf16 %v394, %v394
        %vm397 = vcmask 519168
        %398 = vst.msk [vmem:[%s213] sm:$0xf] %vm397, %v395
        %399 = vst.msk [vmem:[%s213 + $0x4] sm:$0xf] %vm397, %v396
      $region36: #{intrinsic_encoder_forward.11} parent=31 // pred_fallthru
        _
      %p400 = scmp.lt.s32.totalorder %s18, 1
      %s401 = scalar_select %p400, %s18, 1
      %s402 = smul.addr %s401, 2
      %s403 = smul.addr %s402, 4
      %s404 = scalar_lea.vmem %s3, %s403
      // Predicated region
      $region37: #{intrinsic_encoder_forward.11} parent=31 // pred_check
        %p405 = pneg %p119
      $region38: #{intrinsic_encoder_forward.11} parent=31 // pred_check_branch
        %407 = sbr.rel (%p405) target = $region40
      $region39: #{intrinsic_encoder_forward.11} parent=31 // pred_region
        _
      $region40: #{intrinsic_encoder_forward.11} parent=31 // pred_fallthru
        _
    $region32: #{intrinsic_encoder_forward.11} parent=5 // pred_fallthru
      _
    %p408 = scmp.le.s32.totalorder 2, %s9
    // Predicated region
    $region41: #{intrinsic_encoder_forward.11} parent=5 // pred_check
      %p409 = pneg %p408
    $region42: #{intrinsic_encoder_forward.11} parent=5 // pred_check_branch
      %411 = sbr.rel (%p409) target = $region44
    $region43: #{intrinsic_encoder_forward.11} parent=5 // pred_region
      %s412 = ssub.s32 %s9, 2
      // Predicated region
      $region45: #{intrinsic_encoder_forward.11} parent=43 // pred_check
        %p413 = pneg %p125
      $region46: #{intrinsic_encoder_forward.11} parent=43 // pred_check_branch
        %415 = sbr.rel (%p413) target = $region48
      $region47: #{intrinsic_encoder_forward.11} parent=43 // pred_region
        %p416 = scmp.lt.s32.totalorder %s20, 1
        %s417 = scalar_select %p416, %s20, 1
        %s418 = smul.addr %s417, 2
        %s419 = smul.addr %s418, 4
        %s420 = scalar_lea.vmem %s3, %s419
      $region48: #{intrinsic_encoder_forward.11} parent=43 // pred_fallthru
        _
    $region44: #{intrinsic_encoder_forward.11} parent=5 // pred_fallthru
      _
  $region6: #{intrinsic_encoder_forward.11} parent=0 // loop_footer
    %s13 = sadd.s32 1, %s9
  $region7: #{intrinsic_encoder_forward.11} parent=0 // loop_footer_branch
    %8 = sbr.rel target = $region3
  $region8: #{intrinsic_encoder_forward.11} parent=0 // loop_exit
    _

</llo_original>
